<compile_context>
chip_gen: v5e
topology: v5e:2x2
jax: 0.10.0
libtpu: 0.0.40
codegen_flags: <defaults>
</compile_context>

<pallas_src>
import jax
import jax.numpy as jnp
from jax.experimental import pallas as pl
from jax.experimental.pallas import tpu as pltpu


def _upsample_conv_kernel(x_ref, w_ref, b_ref, out_ref):
    """One (batch, row-tile) grid step.

    x_ref  : (1, H+2, W+2, Cin)    bf16  VMEM  zero-padded channels-last input
    w_ref  : (4, 4*Cin, Cout)      bf16  VMEM  folded per-sub-pixel 2x2 weights
    b_ref  : (1, Cout)             f32   VMEM
    out_ref: (1, 4, TH, W, Cout)   f32   VMEM  sub-pixel-major output
    """
    c_in = x_ref.shape[-1]
    _, _, th, w, c_out = out_ref.shape

    row0 = pl.multiple_of(pl.program_id(1) * th, th)
    bias = b_ref[...]  # (1, Cout) f32

    for a in range(2):          # output row sub-pixel
        for b in range(2):      # output col sub-pixel
            # 2x2 neighborhood on the original grid, read from the padded input.
            # Tap order (dr, dc) = (0,0),(0,1),(1,0),(1,1) matches the folded
            # weight row order built in the wrapper.
            taps = [
                x_ref[0, pl.ds(row0 + a + dr, th), pl.ds(b + dc, w), :]
                for dr in range(2) for dc in range(2)
            ]
            patch = jnp.concatenate(taps, axis=-1)           # (TH, W, 4*Cin)
            patch = patch.reshape(th * w, 4 * c_in)          # GEMM LHS (bf16)
            acc = jnp.dot(patch, w_ref[2 * a + b],
                          preferred_element_type=jnp.float32)  # (TH*W, Cout) f32
            acc = acc + bias
            out_ref[0, 2 * a + b] = acc.reshape(th, w, c_out).astype(out_ref.dtype)


def upsample_forward(x, weight, bias, *, row_tile=None, compute_dtype=jnp.bfloat16):
    """Pallas equivalent of nn.Upsample(2, 'nearest') -> Conv2d(Cin, Cout, 3, padding=1).

    x: (B, Cin, H, W), weight: (Cout, Cin, 3, 3), bias: (Cout,).
    Returns (B, Cout, 2H, 2W) in x.dtype.
    """
    b, c_in, h, w = x.shape
    c_out = weight.shape[0]
    assert weight.shape == (c_out, c_in, 3, 3), weight.shape

    if row_tile is None:
        row_tile = 8 if h % 8 == 0 else h
    assert h % row_tile == 0, (h, row_tile)

    # --- Fold the 3x3-on-upsampled conv into four 2x2 convs (one per sub-pixel).
    # R[a, dr, di] = 1 iff original kernel row tap di lands on input-row offset dr
    # for output row sub-pixel a (identical matrix for columns).
    r_fold = jnp.array([[[1.0, 0.0, 0.0], [0.0, 1.0, 1.0]],    # a = 0: rows (r-1, r)
                        [[1.0, 1.0, 0.0], [0.0, 0.0, 1.0]]],   # a = 1: rows (r, r+1)
                       dtype=jnp.float32)
    w32 = weight.astype(jnp.float32)                            # (Cout, Cin, 3, 3)
    # w_fold[a, b, dr, dc, cin, cout]
    w_fold = jnp.einsum('apx,bqy,oixy->abpqio', r_fold, r_fold, w32)
    w_fold = w_fold.reshape(4, 4 * c_in, c_out).astype(compute_dtype)

    # --- Channels-last, zero-padded input (XLA layout plumbing, outside kernel).
    x_pad = jnp.pad(jnp.transpose(x.astype(compute_dtype), (0, 2, 3, 1)),
                    ((0, 0), (1, 1), (1, 1), (0, 0)))           # (B, H+2, W+2, Cin)
    bias2d = bias.astype(jnp.float32).reshape(1, c_out)

    out5 = pl.pallas_call(
        _upsample_conv_kernel,
        out_shape=jax.ShapeDtypeStruct((b, 4, h, w, c_out), jnp.float32),
        grid=(b, h // row_tile),
        in_specs=[
            pl.BlockSpec((1, h + 2, w + 2, c_in), lambda n, t: (n, 0, 0, 0)),
            pl.BlockSpec((4, 4 * c_in, c_out), lambda n, t: (0, 0, 0)),
            pl.BlockSpec((1, c_out), lambda n, t: (0, 0)),
        ],
        out_specs=pl.BlockSpec((1, 4, row_tile, w, c_out),
                               lambda n, t: (n, 0, t, 0, 0)),
        compiler_params=pltpu.CompilerParams(
            dimension_semantics=("parallel", "parallel"),
            vmem_limit_bytes=64 * 1024 * 1024),
    )(x_pad, w_fold, bias2d)

    # (B, (a,b), H, W, Cout) -> (B, Cout, 2H, 2W)   (XLA layout plumbing)
    out = out5.reshape(b, 2, 2, h, w, c_out)
    out = jnp.transpose(out, (0, 5, 3, 1, 4, 2)).reshape(b, c_out, 2 * h, 2 * w)
    return out.astype(x.dtype)


def _reference(x, weight, bias):
    """Pure-JAX reference: nearest 2x upsample + conv3x3 pad1 (PyTorch semantics)."""
    up = jnp.repeat(jnp.repeat(x, 2, axis=2), 2, axis=3)
    out = jax.lax.conv_general_dilated(
        up, weight,
        window_strides=(1, 1),
        padding=((1, 1), (1, 1)),
        dimension_numbers=("NCHW", "OIHW", "NCHW"),
        precision=jax.lax.Precision.HIGHEST,
    )
    return out + bias[None, :, None, None]


if __name__ == "__main__":
    key = jax.random.PRNGKey(0)
    k1, k2, k3 = jax.random.split(key, 3)
    B, C_IN, C_OUT, H, W = 2, 4, 4, 16, 16

    # x rounded through bf16 and weights on a 1/64 grid so the bf16 MXU operands
    # (including the folded 2x2 weights = sums of <=4 original taps) are exactly
    # representable: the check below is a true correctness check of the
    # upsample+conv math, not a precision excuse.
    x = jax.random.normal(k1, (B, C_IN, H, W), dtype=jnp.float32)
    x = x.astype(jnp.bfloat16).astype(jnp.float32)
    weight = jnp.round(jax.random.normal(k2, (C_OUT, C_IN, 3, 3), dtype=jnp.float32) * 8.0) / 64.0
    bias = jax.random.normal(k3, (C_OUT,), dtype=jnp.float32) * 0.1

    out = jax.block_until_ready(upsample_forward(x, weight, bias))

    ref = _reference(x, weight, bias)
    assert out.shape == (B, C_OUT, 2 * H, 2 * W), out.shape
    max_err = float(jnp.max(jnp.abs(out - ref)))
    assert jnp.allclose(out, ref, atol=1e-3, rtol=1e-3), f"mismatch vs reference, max_err={max_err}"

    print("KERNEL_OK")
</pallas_src>

<mosaic_0001>
module attributes {stable_mosaic.version = 11 : i64} {
  func.func @_upsample_conv_kernel(%arg0: i32, %arg1: i32, %arg2: memref<1x18x18x4xbf16, #tpu.memory_space<vmem>>, %arg3: memref<4x16x4xbf16, #tpu.memory_space<vmem>>, %arg4: memref<1x4xf32, #tpu.memory_space<vmem>>, %arg5: memref<1x4x8x16x4xf32, #tpu.memory_space<vmem>>) attributes {dimension_semantics = [#tpu.dimension_semantics<parallel>, #tpu.dimension_semantics<parallel>], iteration_bounds = array<i64: 2, 2>, scalar_prefetch = 0 : i64, scratch_operands = 0 : i64, tpu.core_type = #tpu.core_type<tc>, window_params = [{transform_indices = @transform_0, window_bounds = array<i64: 1, 18, 18, 4>}, {pipeline_mode = #tpu.pipeline_mode<synchronous>, transform_indices = @transform_1, window_bounds = array<i64: 4, 16, 4>}, {pipeline_mode = #tpu.pipeline_mode<synchronous>, transform_indices = @transform_2, window_bounds = array<i64: 1, 4>}, {transform_indices = @transform_3, window_bounds = array<i64: 1, 4, 8, 16, 4>}]} {
    %c8_i32 = arith.constant 8 : i32
    %0 = arith.muli %arg1, %c8_i32 : i32
    %1 = tpu.assume_multiple %0, 8 : i32
    %c0 = arith.constant 0 : index
    %c0_0 = arith.constant 0 : index
    %2 = vector.load %arg4[%c0, %c0_0] : memref<1x4xf32, #tpu.memory_space<vmem>>, vector<1x4xf32>
    %c0_i32 = arith.constant 0 : i32
    %3 = arith.addi %1, %c0_i32 : i32
    %c0_i32_1 = arith.constant 0 : i32
    %4 = arith.addi %3, %c0_i32_1 : i32
    %c0_2 = arith.constant 0 : index
    %5 = arith.index_cast %4 : i32 to index
    %c0_3 = arith.constant 0 : index
    %c0_4 = arith.constant 0 : index
    %6 = vector.load %arg2[%c0_2, %5, %c0_3, %c0_4] : memref<1x18x18x4xbf16, #tpu.memory_space<vmem>>, vector<1x8x16x4xbf16>
    %7 = vector.shape_cast %6 : vector<1x8x16x4xbf16> to vector<8x16x4xbf16>
    %c0_i32_5 = arith.constant 0 : i32
    %8 = arith.addi %1, %c0_i32_5 : i32
    %c0_i32_6 = arith.constant 0 : i32
    %9 = arith.addi %8, %c0_i32_6 : i32
    %c0_7 = arith.constant 0 : index
    %10 = arith.index_cast %9 : i32 to index
    %c1 = arith.constant 1 : index
    %c0_8 = arith.constant 0 : index
    %11 = vector.load %arg2[%c0_7, %10, %c1, %c0_8] : memref<1x18x18x4xbf16, #tpu.memory_space<vmem>>, vector<1x8x16x4xbf16>
    %12 = vector.shape_cast %11 : vector<1x8x16x4xbf16> to vector<8x16x4xbf16>
    %c0_i32_9 = arith.constant 0 : i32
    %13 = arith.addi %1, %c0_i32_9 : i32
    %c1_i32 = arith.constant 1 : i32
    %14 = arith.addi %13, %c1_i32 : i32
    %c0_10 = arith.constant 0 : index
    %15 = arith.index_cast %14 : i32 to index
    %c0_11 = arith.constant 0 : index
    %c0_12 = arith.constant 0 : index
    %16 = vector.load %arg2[%c0_10, %15, %c0_11, %c0_12] : memref<1x18x18x4xbf16, #tpu.memory_space<vmem>>, vector<1x8x16x4xbf16>
    %17 = vector.shape_cast %16 : vector<1x8x16x4xbf16> to vector<8x16x4xbf16>
    %c0_i32_13 = arith.constant 0 : i32
    %18 = arith.addi %1, %c0_i32_13 : i32
    %c1_i32_14 = arith.constant 1 : i32
    %19 = arith.addi %18, %c1_i32_14 : i32
    %c0_15 = arith.constant 0 : index
    %20 = arith.index_cast %19 : i32 to index
    %c1_16 = arith.constant 1 : index
    %c0_17 = arith.constant 0 : index
    %21 = vector.load %arg2[%c0_15, %20, %c1_16, %c0_17] : memref<1x18x18x4xbf16, #tpu.memory_space<vmem>>, vector<1x8x16x4xbf16>
    %22 = vector.shape_cast %21 : vector<1x8x16x4xbf16> to vector<8x16x4xbf16>
    %23 = tpu.concatenate %7, %12, %17, %22 in 2 : vector<8x16x4xbf16>, vector<8x16x4xbf16>, vector<8x16x4xbf16>, vector<8x16x4xbf16> -> vector<8x16x16xbf16>
    %24 = vector.shape_cast %23 : vector<8x16x16xbf16> to vector<128x16xbf16>
    %c0_18 = arith.constant 0 : index
    %c0_19 = arith.constant 0 : index
    %c0_20 = arith.constant 0 : index
    %25 = vector.load %arg3[%c0_18, %c0_19, %c0_20] : memref<4x16x4xbf16, #tpu.memory_space<vmem>>, vector<1x16x4xbf16>
    %26 = vector.shape_cast %25 : vector<1x16x4xbf16> to vector<16x4xbf16>
    %cst = arith.constant dense<0.000000e+00> : vector<128x4xf32>
    %27 = tpu.matmul %24, %26, %cst {dimension_numbers = #tpu.dot_dimension_numbers<[1], [0], [0], [1], [0, 0, 1, 1], [], []>} : vector<128x16xbf16>, vector<16x4xbf16>, vector<128x4xf32> -> vector<128x4xf32>
    %28 = vector.broadcast %2 : vector<1x4xf32> to vector<128x4xf32>
    %29 = arith.addf %27, %28 : vector<128x4xf32>
    %30 = vector.shape_cast %29 : vector<128x4xf32> to vector<8x16x4xf32>
    %c0_21 = arith.constant 0 : index
    %c0_22 = arith.constant 0 : index
    %c0_23 = arith.constant 0 : index
    %c0_24 = arith.constant 0 : index
    %c0_25 = arith.constant 0 : index
    %31 = vector.load %arg5[%c0_21, %c0_22, %c0_23, %c0_24, %c0_25] : memref<1x4x8x16x4xf32, #tpu.memory_space<vmem>>, vector<1x1x8x16x4xf32>
    %32 = vector.shape_cast %31 : vector<1x1x8x16x4xf32> to vector<8x16x4xf32>
    %33 = vector.shape_cast %30 : vector<8x16x4xf32> to vector<1x1x8x16x4xf32>
    tpu.vector_store %arg5[%c0_21, %c0_22, %c0_23, %c0_24, %c0_25], %33 {strides = array<i32>} : memref<1x4x8x16x4xf32, #tpu.memory_space<vmem>>, vector<1x1x8x16x4xf32>,
    %c0_i32_26 = arith.constant 0 : i32
    %34 = arith.addi %1, %c0_i32_26 : i32
    %c0_i32_27 = arith.constant 0 : i32
    %35 = arith.addi %34, %c0_i32_27 : i32
    %c0_28 = arith.constant 0 : index
    %36 = arith.index_cast %35 : i32 to index
    %c1_29 = arith.constant 1 : index
    %c0_30 = arith.constant 0 : index
    %37 = vector.load %arg2[%c0_28, %36, %c1_29, %c0_30] : memref<1x18x18x4xbf16, #tpu.memory_space<vmem>>, vector<1x8x16x4xbf16>
    %38 = vector.shape_cast %37 : vector<1x8x16x4xbf16> to vector<8x16x4xbf16>
    %c0_i32_31 = arith.constant 0 : i32
    %39 = arith.addi %1, %c0_i32_31 : i32
    %c0_i32_32 = arith.constant 0 : i32
    %40 = arith.addi %39, %c0_i32_32 : i32
    %c0_33 = arith.constant 0 : index
    %41 = arith.index_cast %40 : i32 to index
    %c2 = arith.constant 2 : index
    %c0_34 = arith.constant 0 : index
    %42 = vector.load %arg2[%c0_33, %41, %c2, %c0_34] : memref<1x18x18x4xbf16, #tpu.memory_space<vmem>>, vector<1x8x16x4xbf16>
    %43 = vector.shape_cast %42 : vector<1x8x16x4xbf16> to vector<8x16x4xbf16>
    %c0_i32_35 = arith.constant 0 : i32
    %44 = arith.addi %1, %c0_i32_35 : i32
    %c1_i32_36 = arith.constant 1 : i32
    %45 = arith.addi %44, %c1_i32_36 : i32
    %c0_37 = arith.constant 0 : index
    %46 = arith.index_cast %45 : i32 to index
    %c1_38 = arith.constant 1 : index
    %c0_39 = arith.constant 0 : index
    %47 = vector.load %arg2[%c0_37, %46, %c1_38, %c0_39] : memref<1x18x18x4xbf16, #tpu.memory_space<vmem>>, vector<1x8x16x4xbf16>
    %48 = vector.shape_cast %47 : vector<1x8x16x4xbf16> to vector<8x16x4xbf16>
    %c0_i32_40 = arith.constant 0 : i32
    %49 = arith.addi %1, %c0_i32_40 : i32
    %c1_i32_41 = arith.constant 1 : i32
    %50 = arith.addi %49, %c1_i32_41 : i32
    %c0_42 = arith.constant 0 : index
    %51 = arith.index_cast %50 : i32 to index
    %c2_43 = arith.constant 2 : index
    %c0_44 = arith.constant 0 : index
    %52 = vector.load %arg2[%c0_42, %51, %c2_43, %c0_44] : memref<1x18x18x4xbf16, #tpu.memory_space<vmem>>, vector<1x8x16x4xbf16>
    %53 = vector.shape_cast %52 : vector<1x8x16x4xbf16> to vector<8x16x4xbf16>
    %54 = tpu.concatenate %38, %43, %48, %53 in 2 : vector<8x16x4xbf16>, vector<8x16x4xbf16>, vector<8x16x4xbf16>, vector<8x16x4xbf16> -> vector<8x16x16xbf16>
    %55 = vector.shape_cast %54 : vector<8x16x16xbf16> to vector<128x16xbf16>
    %c1_45 = arith.constant 1 : index
    %c0_46 = arith.constant 0 : index
    %c0_47 = arith.constant 0 : index
    %56 = vector.load %arg3[%c1_45, %c0_46, %c0_47] : memref<4x16x4xbf16, #tpu.memory_space<vmem>>, vector<1x16x4xbf16>
    %57 = vector.shape_cast %56 : vector<1x16x4xbf16> to vector<16x4xbf16>
    %cst_48 = arith.constant dense<0.000000e+00> : vector<128x4xf32>
    %58 = tpu.matmul %55, %57, %cst_48 {dimension_numbers = #tpu.dot_dimension_numbers<[1], [0], [0], [1], [0, 0, 1, 1], [], []>} : vector<128x16xbf16>, vector<16x4xbf16>, vector<128x4xf32> -> vector<128x4xf32>
    %59 = vector.broadcast %2 : vector<1x4xf32> to vector<128x4xf32>
    %60 = arith.addf %58, %59 : vector<128x4xf32>
    %61 = vector.shape_cast %60 : vector<128x4xf32> to vector<8x16x4xf32>
    %c0_49 = arith.constant 0 : index
    %c1_50 = arith.constant 1 : index
    %c0_51 = arith.constant 0 : index
    %c0_52 = arith.constant 0 : index
    %c0_53 = arith.constant 0 : index
    %62 = vector.load %arg5[%c0_49, %c1_50, %c0_51, %c0_52, %c0_53] : memref<1x4x8x16x4xf32, #tpu.memory_space<vmem>>, vector<1x1x8x16x4xf32>
    %63 = vector.shape_cast %62 : vector<1x1x8x16x4xf32> to vector<8x16x4xf32>
    %64 = vector.shape_cast %61 : vector<8x16x4xf32> to vector<1x1x8x16x4xf32>
    tpu.vector_store %arg5[%c0_49, %c1_50, %c0_51, %c0_52, %c0_53], %64 {strides = array<i32>} : memref<1x4x8x16x4xf32, #tpu.memory_space<vmem>>, vector<1x1x8x16x4xf32>,
    %c1_i32_54 = arith.constant 1 : i32
    %65 = arith.addi %1, %c1_i32_54 : i32
    %c0_i32_55 = arith.constant 0 : i32
    %66 = arith.addi %65, %c0_i32_55 : i32
    %c0_56 = arith.constant 0 : index
    %67 = arith.index_cast %66 : i32 to index
    %c0_57 = arith.constant 0 : index
    %c0_58 = arith.constant 0 : index
    %68 = vector.load %arg2[%c0_56, %67, %c0_57, %c0_58] : memref<1x18x18x4xbf16, #tpu.memory_space<vmem>>, vector<1x8x16x4xbf16>
    %69 = vector.shape_cast %68 : vector<1x8x16x4xbf16> to vector<8x16x4xbf16>
    %c1_i32_59 = arith.constant 1 : i32
    %70 = arith.addi %1, %c1_i32_59 : i32
    %c0_i32_60 = arith.constant 0 : i32
    %71 = arith.addi %70, %c0_i32_60 : i32
    %c0_61 = arith.constant 0 : index
    %72 = arith.index_cast %71 : i32 to index
    %c1_62 = arith.constant 1 : index
    %c0_63 = arith.constant 0 : index
    %73 = vector.load %arg2[%c0_61, %72, %c1_62, %c0_63] : memref<1x18x18x4xbf16, #tpu.memory_space<vmem>>, vector<1x8x16x4xbf16>
    %74 = vector.shape_cast %73 : vector<1x8x16x4xbf16> to vector<8x16x4xbf16>
    %c1_i32_64 = arith.constant 1 : i32
    %75 = arith.addi %1, %c1_i32_64 : i32
    %c1_i32_65 = arith.constant 1 : i32
    %76 = arith.addi %75, %c1_i32_65 : i32
    %c0_66 = arith.constant 0 : index
    %77 = arith.index_cast %76 : i32 to index
    %c0_67 = arith.constant 0 : index
    %c0_68 = arith.constant 0 : index
    %78 = vector.load %arg2[%c0_66, %77, %c0_67, %c0_68] : memref<1x18x18x4xbf16, #tpu.memory_space<vmem>>, vector<1x8x16x4xbf16>
    %79 = vector.shape_cast %78 : vector<1x8x16x4xbf16> to vector<8x16x4xbf16>
    %c1_i32_69 = arith.constant 1 : i32
    %80 = arith.addi %1, %c1_i32_69 : i32
    %c1_i32_70 = arith.constant 1 : i32
    %81 = arith.addi %80, %c1_i32_70 : i32
    %c0_71 = arith.constant 0 : index
    %82 = arith.index_cast %81 : i32 to index
    %c1_72 = arith.constant 1 : index
    %c0_73 = arith.constant 0 : index
    %83 = vector.load %arg2[%c0_71, %82, %c1_72, %c0_73] : memref<1x18x18x4xbf16, #tpu.memory_space<vmem>>, vector<1x8x16x4xbf16>
    %84 = vector.shape_cast %83 : vector<1x8x16x4xbf16> to vector<8x16x4xbf16>
    %85 = tpu.concatenate %69, %74, %79, %84 in 2 : vector<8x16x4xbf16>, vector<8x16x4xbf16>, vector<8x16x4xbf16>, vector<8x16x4xbf16> -> vector<8x16x16xbf16>
    %86 = vector.shape_cast %85 : vector<8x16x16xbf16> to vector<128x16xbf16>
    %c2_74 = arith.constant 2 : index
    %c0_75 = arith.constant 0 : index
    %c0_76 = arith.constant 0 : index
    %87 = vector.load %arg3[%c2_74, %c0_75, %c0_76] : memref<4x16x4xbf16, #tpu.memory_space<vmem>>, vector<1x16x4xbf16>
    %88 = vector.shape_cast %87 : vector<1x16x4xbf16> to vector<16x4xbf16>
    %cst_77 = arith.constant dense<0.000000e+00> : vector<128x4xf32>
    %89 = tpu.matmul %86, %88, %cst_77 {dimension_numbers = #tpu.dot_dimension_numbers<[1], [0], [0], [1], [0, 0, 1, 1], [], []>} : vector<128x16xbf16>, vector<16x4xbf16>, vector<128x4xf32> -> vector<128x4xf32>
    %90 = vector.broadcast %2 : vector<1x4xf32> to vector<128x4xf32>
    %91 = arith.addf %89, %90 : vector<128x4xf32>
    %92 = vector.shape_cast %91 : vector<128x4xf32> to vector<8x16x4xf32>
    %c0_78 = arith.constant 0 : index
    %c2_79 = arith.constant 2 : index
    %c0_80 = arith.constant 0 : index
    %c0_81 = arith.constant 0 : index
    %c0_82 = arith.constant 0 : index
    %93 = vector.load %arg5[%c0_78, %c2_79, %c0_80, %c0_81, %c0_82] : memref<1x4x8x16x4xf32, #tpu.memory_space<vmem>>, vector<1x1x8x16x4xf32>
    %94 = vector.shape_cast %93 : vector<1x1x8x16x4xf32> to vector<8x16x4xf32>
    %95 = vector.shape_cast %92 : vector<8x16x4xf32> to vector<1x1x8x16x4xf32>
    tpu.vector_store %arg5[%c0_78, %c2_79, %c0_80, %c0_81, %c0_82], %95 {strides = array<i32>} : memref<1x4x8x16x4xf32, #tpu.memory_space<vmem>>, vector<1x1x8x16x4xf32>,
    %c1_i32_83 = arith.constant 1 : i32
    %96 = arith.addi %1, %c1_i32_83 : i32
    %c0_i32_84 = arith.constant 0 : i32
    %97 = arith.addi %96, %c0_i32_84 : i32
    %c0_85 = arith.constant 0 : index
    %98 = arith.index_cast %97 : i32 to index
    %c1_86 = arith.constant 1 : index
    %c0_87 = arith.constant 0 : index
    %99 = vector.load %arg2[%c0_85, %98, %c1_86, %c0_87] : memref<1x18x18x4xbf16, #tpu.memory_space<vmem>>, vector<1x8x16x4xbf16>
    %100 = vector.shape_cast %99 : vector<1x8x16x4xbf16> to vector<8x16x4xbf16>
    %c1_i32_88 = arith.constant 1 : i32
    %101 = arith.addi %1, %c1_i32_88 : i32
    %c0_i32_89 = arith.constant 0 : i32
    %102 = arith.addi %101, %c0_i32_89 : i32
    %c0_90 = arith.constant 0 : index
    %103 = arith.index_cast %102 : i32 to index
    %c2_91 = arith.constant 2 : index
    %c0_92 = arith.constant 0 : index
    %104 = vector.load %arg2[%c0_90, %103, %c2_91, %c0_92] : memref<1x18x18x4xbf16, #tpu.memory_space<vmem>>, vector<1x8x16x4xbf16>
    %105 = vector.shape_cast %104 : vector<1x8x16x4xbf16> to vector<8x16x4xbf16>
    %c1_i32_93 = arith.constant 1 : i32
    %106 = arith.addi %1, %c1_i32_93 : i32
    %c1_i32_94 = arith.constant 1 : i32
    %107 = arith.addi %106, %c1_i32_94 : i32
    %c0_95 = arith.constant 0 : index
    %108 = arith.index_cast %107 : i32 to index
    %c1_96 = arith.constant 1 : index
    %c0_97 = arith.constant 0 : index
    %109 = vector.load %arg2[%c0_95, %108, %c1_96, %c0_97] : memref<1x18x18x4xbf16, #tpu.memory_space<vmem>>, vector<1x8x16x4xbf16>
    %110 = vector.shape_cast %109 : vector<1x8x16x4xbf16> to vector<8x16x4xbf16>
    %c1_i32_98 = arith.constant 1 : i32
    %111 = arith.addi %1, %c1_i32_98 : i32
    %c1_i32_99 = arith.constant 1 : i32
    %112 = arith.addi %111, %c1_i32_99 : i32
    %c0_100 = arith.constant 0 : index
    %113 = arith.index_cast %112 : i32 to index
    %c2_101 = arith.constant 2 : index
    %c0_102 = arith.constant 0 : index
    %114 = vector.load %arg2[%c0_100, %113, %c2_101, %c0_102] : memref<1x18x18x4xbf16, #tpu.memory_space<vmem>>, vector<1x8x16x4xbf16>
    %115 = vector.shape_cast %114 : vector<1x8x16x4xbf16> to vector<8x16x4xbf16>
    %116 = tpu.concatenate %100, %105, %110, %115 in 2 : vector<8x16x4xbf16>, vector<8x16x4xbf16>, vector<8x16x4xbf16>, vector<8x16x4xbf16> -> vector<8x16x16xbf16>
    %117 = vector.shape_cast %116 : vector<8x16x16xbf16> to vector<128x16xbf16>
    %c3 = arith.constant 3 : index
    %c0_103 = arith.constant 0 : index
    %c0_104 = arith.constant 0 : index
    %118 = vector.load %arg3[%c3, %c0_103, %c0_104] : memref<4x16x4xbf16, #tpu.memory_space<vmem>>, vector<1x16x4xbf16>
    %119 = vector.shape_cast %118 : vector<1x16x4xbf16> to vector<16x4xbf16>
    %cst_105 = arith.constant dense<0.000000e+00> : vector<128x4xf32>
    %120 = tpu.matmul %117, %119, %cst_105 {dimension_numbers = #tpu.dot_dimension_numbers<[1], [0], [0], [1], [0, 0, 1, 1], [], []>} : vector<128x16xbf16>, vector<16x4xbf16>, vector<128x4xf32> -> vector<128x4xf32>
    %121 = vector.broadcast %2 : vector<1x4xf32> to vector<128x4xf32>
    %122 = arith.addf %120, %121 : vector<128x4xf32>
    %123 = vector.shape_cast %122 : vector<128x4xf32> to vector<8x16x4xf32>
    %c0_106 = arith.constant 0 : index
    %c3_107 = arith.constant 3 : index
    %c0_108 = arith.constant 0 : index
    %c0_109 = arith.constant 0 : index
    %c0_110 = arith.constant 0 : index
    %124 = vector.load %arg5[%c0_106, %c3_107, %c0_108, %c0_109, %c0_110] : memref<1x4x8x16x4xf32, #tpu.memory_space<vmem>>, vector<1x1x8x16x4xf32>
    %125 = vector.shape_cast %124 : vector<1x1x8x16x4xf32> to vector<8x16x4xf32>
    %126 = vector.shape_cast %123 : vector<8x16x4xf32> to vector<1x1x8x16x4xf32>
    tpu.vector_store %arg5[%c0_106, %c3_107, %c0_108, %c0_109, %c0_110], %126 {strides = array<i32>} : memref<1x4x8x16x4xf32, #tpu.memory_space<vmem>>, vector<1x1x8x16x4xf32>,
    return
  }
  func.func @transform_0(%arg0: i32, %arg1: i32) -> (i32, i32, i32, i32) {
    %c0_i32 = arith.constant 0 : i32
    %c0_i32_0 = arith.constant 0 : i32
    %c0_i32_1 = arith.constant 0 : i32
    %c0_i32_2 = arith.constant 0 : i32
    return %arg0, %c0_i32, %c0_i32_0, %c0_i32_1 : i32, i32, i32, i32
  }
  func.func @transform_1(%arg0: i32, %arg1: i32) -> (i32, i32, i32) {
    %c0_i32 = arith.constant 0 : i32
    %c0_i32_0 = arith.constant 0 : i32
    %c0_i32_1 = arith.constant 0 : i32
    %c0_i32_2 = arith.constant 0 : i32
    return %c0_i32, %c0_i32_0, %c0_i32_1 : i32, i32, i32
  }
  func.func @transform_2(%arg0: i32, %arg1: i32) -> (i32, i32) {
    %c0_i32 = arith.constant 0 : i32
    %c0_i32_0 = arith.constant 0 : i32
    %c0_i32_1 = arith.constant 0 : i32
    return %c0_i32, %c0_i32_0 : i32, i32
  }
  func.func @transform_3(%arg0: i32, %arg1: i32) -> (i32, i32, i32, i32, i32) {
    %c0_i32 = arith.constant 0 : i32
    %c0_i32_0 = arith.constant 0 : i32
    %c0_i32_1 = arith.constant 0 : i32
    %c0_i32_2 = arith.constant 0 : i32
    return %arg0, %c0_i32, %arg1, %c0_i32_0, %c0_i32_1 : i32, i32, i32, i32, i32
  }
}

</mosaic_0001>

<llo_original>
// kernel: tpu_custom_call.1
$region0: #{tpu_custom_call.1}
  #allocation0 [shape = 'u32[]', space=smem, size = 0x4, offset = 0x4, fixed_abs, tag = 'smem constant byte address 0x4 - core index']
  #allocation1 [shape = 'u32[72,128]{1,0:T(1,128)}', space=vmem, size = 0x9000, scoped, tag = 'internal scratch']
  %s0 = inlined_call_operand.vmem [shape: bf16[2,18,18,4], index: 0, kind: input, shape index: {}]
  %s1 = inlined_call_operand.vmem [shape: bf16[4,16,4], index: 1, kind: input, shape index: {}]
  %s2 = inlined_call_operand.vmem [shape: f32[1,4], index: 2, kind: input, shape index: {}]
  %s3 = inlined_call_operand.vmem [shape: f32[2,4,16,16,4], index: 3, kind: output, shape index: {}]
  %s4 = sld [smem:[#allocation0]]
  $region79: #{tpu_custom_call.1} parent=0
    _
  %s6 = ssub.s32 1, %s4
  %s7 = scalar_select 0, %s6, %s4
  $region1: #{tpu_custom_call.1} parent=0
    #allocation2 [shape = 'u8[524288]{0}', space=vmem, size = 0x80000, scoped, tag = 'output window, operand 0']
    loop: start=0, step=1, limit=6
    $region2: #{tpu_custom_call.1} parent=1 // loop_pre_header
      _
    $region3: #{tpu_custom_call.1} parent=1 // loop_header
      %s9 = sphi 0, %s13
      %p10 = scmp.ge.s32.totalorder %s9, 6
      %s16 = sphi 0, %s28
      %s17 = sphi 0, %s24
      %s18 = sphi 0, %s16
      %s19 = sphi 0, %s17
      %s20 = sphi 0, %s18
      %s21 = sphi 0, %s19
      %s31 = sphi 0, %s33
      %s34 = sphi 0, %s31
      %s35 = sphi 0, %s34
      %s51 = sphi 0, %s35
      %s55 = sphi 0, %s55
      %s57 = sphi 0, %s55
      %s58 = sphi 0, %s57
      %s72 = sphi 0, %s58
      %s76 = sphi 0, %s76
      %s78 = sphi 0, %s76
      %s79 = sphi 0, %s78
      %s93 = sphi 0, %s79
      %s101 = sphi 0, %s103
      %s104 = sphi 0, %s101
      %s105 = sphi 0, %s104
      %s121 = sphi 0, %s105
    $region4: #{tpu_custom_call.1} parent=1 // loop_header_branch
      %12 = sbr.rel (%p10) target = $region8
    $region5: #{tpu_custom_call.1} parent=1 // loop_body
      %s14 = ssub.s32 %s9, 1
      %s15 = ssub.s32 %s9, 2
      %s22 = sadd.s32 1, %s17
      %p23 = scmp.ge.s32.totalorder %s22, 2
      %s24 = scalar_select %p23, 0, %s22
      %s25 = sadd.s32 1, %s16
      %s26 = scalar_select %p23, %s25, %s16
      %p27 = scmp.ge.s32.totalorder %s26, 2
      %s28 = scalar_select %p27, 0, %s26
      %s29 = ssub.s32 %s16, %s28
      %p30 = scmp.eq.s32.totalorder %s29, 0
      %s32 = sadd.s32 %s31, 1
      %s33 = scalar_select %p30, %s31, %s32
      %p36 = pneg %p30
      %p37 = scmp.eq.s32.totalorder %s9, 3
      %p38 = por %p36, %p37
      %p39 = scmp.ne.s32.totalorder %s31, %s34
      %p40 = scmp.eq.s32.totalorder %s9, 0
      %p41 = por %p39, %p40
      %p42 = scmp.ne.s32.totalorder %s31, %s34
      %p43 = scmp.eq.s32.totalorder %s14, 3
      %p44 = por %p42, %p43
      %p45 = scmp.ne.s32.totalorder %s34, %s35
      %p46 = scmp.eq.s32.totalorder %s14, 0
      %p47 = por %p45, %p46
      %p48 = scmp.ne.s32.totalorder %s34, %s35
      %p49 = scmp.eq.s32.totalorder %s15, 3
      %p50 = por %p48, %p49
      %p52 = scmp.ne.s32.totalorder %s35, %s51
      %p53 = scmp.eq.s32.totalorder %s15, 0
      %p54 = por %p52, %p53
      %s56 = sadd.s32 %s55, 1
      %p59 = scmp.eq.s32.totalorder %s9, 3
      %p60 = scmp.ne.s32.totalorder %s55, %s57
      %p61 = scmp.eq.s32.totalorder %s9, 0
      %p62 = por %p60, %p61
      %p63 = scmp.ne.s32.totalorder %s55, %s57
      %p64 = scmp.eq.s32.totalorder %s14, 3
      %p65 = por %p63, %p64
      %p66 = scmp.ne.s32.totalorder %s57, %s58
      %p67 = scmp.eq.s32.totalorder %s14, 0
      %p68 = por %p66, %p67
      %p69 = scmp.ne.s32.totalorder %s57, %s58
      %p70 = scmp.eq.s32.totalorder %s15, 3
      %p71 = por %p69, %p70
      %p73 = scmp.ne.s32.totalorder %s58, %s72
      %p74 = scmp.eq.s32.totalorder %s15, 0
      %p75 = por %p73, %p74
      %s77 = sadd.s32 %s76, 1
      %p80 = scmp.eq.s32.totalorder %s9, 3
      %p81 = scmp.ne.s32.totalorder %s76, %s78
      %p82 = scmp.eq.s32.totalorder %s9, 0
      %p83 = por %p81, %p82
      %p84 = scmp.ne.s32.totalorder %s76, %s78
      %p85 = scmp.eq.s32.totalorder %s14, 3
      %p86 = por %p84, %p85
      %p87 = scmp.ne.s32.totalorder %s78, %s79
      %p88 = scmp.eq.s32.totalorder %s14, 0
      %p89 = por %p87, %p88
      %p90 = scmp.ne.s32.totalorder %s78, %s79
      %p91 = scmp.eq.s32.totalorder %s15, 3
      %p92 = por %p90, %p91
      %p94 = scmp.ne.s32.totalorder %s79, %s93
      %p95 = scmp.eq.s32.totalorder %s15, 0
      %p96 = por %p94, %p95
      %s97 = ssub.s32 %s16, %s28
      %s98 = ssub.s32 %s17, %s24
      %s99 = sor.u32 %s97, %s98
      %p100 = scmp.eq.s32.totalorder %s99, 0
      %s102 = sadd.s32 %s101, 1
      %s103 = scalar_select %p100, %s101, %s102
      %p106 = pneg %p100
      %p107 = scmp.eq.s32.totalorder %s9, 3
      %p108 = por %p106, %p107
      %p109 = scmp.ne.s32.totalorder %s101, %s104
      %p110 = scmp.eq.s32.totalorder %s9, 0
      %p111 = por %p109, %p110
      %p112 = scmp.ne.s32.totalorder %s101, %s104
      %p113 = scmp.eq.s32.totalorder %s14, 3
      %p114 = por %p112, %p113
      %p115 = scmp.ne.s32.totalorder %s104, %s105
      %p116 = scmp.eq.s32.totalorder %s14, 0
      %p117 = por %p115, %p116
      %p118 = scmp.ne.s32.totalorder %s104, %s105
      %p119 = scmp.eq.s32.totalorder %s15, 3
      %p120 = por %p118, %p119
      %p122 = scmp.ne.s32.totalorder %s105, %s121
      %p123 = scmp.eq.s32.totalorder %s15, 0
      %p124 = por %p122, %p123
      %p125 = scmp.le.s32.totalorder 1, %s9
      %p126 = scmp.lt.s32.totalorder %s9, 5
      %p127 = pnand %p125, %p126
      %p128 = pneg %p127
      // Predicated region
      $region9: #{tpu_custom_call.1} parent=5 // pred_check
        _
      $region10: #{tpu_custom_call.1} parent=5 // pred_check_branch
        %130 = sbr.rel (%p127) target = $region12
      $region11: #{tpu_custom_call.1} parent=5 // pred_region
        %s131 = ssub.s32 %s9, 1
        // Predicated region
        $region13: #{tpu_custom_call.1} parent=11 // pred_check
          %p132 = pneg %p68
        $region14: #{tpu_custom_call.1} parent=11 // pred_check_branch
          %134 = sbr.rel (%p132) target = $region16
        $region15: #{tpu_custom_call.1} parent=11 // pred_region
          _
        $region16: #{tpu_custom_call.1} parent=11 // pred_fallthru
          _
        // Predicated region
        $region17: #{tpu_custom_call.1} parent=11 // pred_check
          %p135 = pneg %p89
        $region18: #{tpu_custom_call.1} parent=11 // pred_check_branch
          %137 = sbr.rel (%p135) target = $region20
        $region19: #{tpu_custom_call.1} parent=11 // pred_region
          _
        $region20: #{tpu_custom_call.1} parent=11 // pred_fallthru
          _
      $region12: #{tpu_custom_call.1} parent=5 // pred_fallthru
        _
      %p138 = scmp.lt.s32.totalorder %s9, 4
      // Predicated region
      $region21: #{tpu_custom_call.1} parent=5 // pred_check
        %p139 = pneg %p138
      $region22: #{tpu_custom_call.1} parent=5 // pred_check_branch
        %141 = sbr.rel (%p139) target = $region24
      $region23: #{tpu_custom_call.1} parent=5 // pred_region
        // Predicated region
        $region25: #{tpu_custom_call.1} parent=23 // pred_check
          %p142 = pneg %p41
        $region26: #{tpu_custom_call.1} parent=23 // pred_check_branch
          %144 = sbr.rel (%p142) target = $region28
        $region27: #{tpu_custom_call.1} parent=23 // pred_region
          %p145 = scmp.lt.s32.totalorder %s16, 1
          %s146 = scalar_select %p145, %s16, 1
          %s147 = smul.addr %s146, 54
          %s148 = smul.addr %s147, 4
          %s149 = scalar_lea.vmem %s0, %s148
        $region28: #{tpu_custom_call.1} parent=23 // pred_fallthru
          _
      $region24: #{tpu_custom_call.1} parent=5 // pred_fallthru
        _
      %p150 = scmp.le.s32.totalorder 1, %s9
      %p151 = scmp.lt.s32.totalorder %s9, 5
      %p152 = pnand %p150, %p151
      %p153 = pneg %p152
      // Predicated region
      $region29: #{tpu_custom_call.1} parent=5 // pred_check
        _
      $region30: #{tpu_custom_call.1} parent=5 // pred_check_branch
        %155 = sbr.rel (%p152) target = $region32
      $region31: #{tpu_custom_call.1} parent=5 // pred_region
        %s156 = ssub.s32 %s9, 1
        %p157 = scmp.lt.s32.totalorder %s18, 1
        %s158 = scalar_select %p157, %s18, 1
        %s159 = smul.addr %s158, 54
        %s160 = smul.addr %s159, 4
        %s161 = scalar_lea.vmem %s0, %s160
        %p162 = pneg %p47
        %p163 = pneg %p44
        %p164 = pneg %p68
        %p165 = pneg %p65
        %p166 = pneg %p89
        %p167 = pneg %p86
        %p168 = pneg %p117
        %p169 = pneg %p114
        %s170 = sand.u32 %s104, 1
        %s171 = sand.u32 %s104, 1
        %s172 = smul.addr %s171, 512
        %s173 = scalar_lea.vmem [#allocation2], %s172
        %p174 = scmp.lt.s32.totalorder %s18, 1
        %s175 = scalar_select %p174, %s18, 1
        %s176 = smul.addr %s175, 54
        %s177 = smul.addr %s176, 4
        %s178 = scalar_lea.vmem %s0, %s177
        %s179 = smul.u32 8, %s19
        %s181 = smul.u32 %s19, 8
        %v182 = vld [vmem:[%s2] sm:$0x1]
        %s183 = smul.u32 %s181, 3
        %s184 = smul.addr %s183, 4
        %s185 = scalar_lea.vmem %s178, %s184
        %v186 = vld [vmem:[%s185] sm:$0xf]
        %v187 = vld [vmem:[%s185 + $0x4] sm:$0xf]
        %v188 = vld [vmem:[%s185 + $0xc] sm:$0xf]
        %v189 = vld [vmem:[%s185 + $0x10] sm:$0xf]
        %v190 = vld [vmem:[%s185 + $0x18] sm:$0xf]
        %v191 = vld [vmem:[%s185 + $0x1c] sm:$0xf]
        %v192 = vld [vmem:[%s185 + $0x24] sm:$0xf]
        %v193 = vld [vmem:[%s185 + $0x28] sm:$0xf]
        %v194 = vld [vmem:[%s185 + $0x30] sm:$0xf]
        %v195 = vld [vmem:[%s185 + $0x34] sm:$0xf]
        %v196 = vld [vmem:[%s185 + $0x3c] sm:$0xf]
        %v197 = vld [vmem:[%s185 + $0x40] sm:$0xf]
        %v198 = vld [vmem:[%s185 + $0x48] sm:$0xf]
        %v199 = vld [vmem:[%s185 + $0x4c] sm:$0xf]
        %v200 = vld [vmem:[%s185 + $0x54] sm:$0xf]
        %v201 = vld [vmem:[%s185 + $0x58] sm:$0xf]
        %v202 = vld [vmem:[%s185 + $0x8] sm:$0x1]
        %v203 = vld [vmem:[%s185 + $0x14] sm:$0x1]
        %v204 = vld [vmem:[%s185 + $0x20] sm:$0x1]
        %v205 = vld [vmem:[%s185 + $0x2c] sm:$0x1]
        %v206 = vld [vmem:[%s185 + $0x38] sm:$0x1]
        %v207 = vld [vmem:[%s185 + $0x44] sm:$0x1]
        %v208 = vld [vmem:[%s185 + $0x50] sm:$0x1]
        %v209 = vld [vmem:[%s185 + $0x5c] sm:$0x1]
        %s210 = sadd.s32 %s181, 1
        %s211 = smul.u32 %s210, 3
        %s212 = smul.addr %s211, 4
        %s213 = scalar_lea.vmem %s178, %s212
        %v214 = vld [vmem:[%s213] sm:$0xf]
        %v215 = vld [vmem:[%s213 + $0x4] sm:$0xf]
        %v216 = vld [vmem:[%s213 + $0xc] sm:$0xf]
        %v217 = vld [vmem:[%s213 + $0x10] sm:$0xf]
        %v218 = vld [vmem:[%s213 + $0x18] sm:$0xf]
        %v219 = vld [vmem:[%s213 + $0x1c] sm:$0xf]
        %v220 = vld [vmem:[%s213 + $0x24] sm:$0xf]
        %v221 = vld [vmem:[%s213 + $0x28] sm:$0xf]
        %v222 = vld [vmem:[%s213 + $0x30] sm:$0xf]
        %v223 = vld [vmem:[%s213 + $0x34] sm:$0xf]
        %v224 = vld [vmem:[%s213 + $0x3c] sm:$0xf]
        %v225 = vld [vmem:[%s213 + $0x40] sm:$0xf]
        %v226 = vld [vmem:[%s213 + $0x48] sm:$0xf]
        %v227 = vld [vmem:[%s213 + $0x4c] sm:$0xf]
        %v228 = vld [vmem:[%s213 + $0x54] sm:$0xf]
        %v229 = vld [vmem:[%s213 + $0x58] sm:$0xf]
        %v230 = vld [vmem:[%s213 + $0x8] sm:$0x1]
        %v231 = vld [vmem:[%s213 + $0x14] sm:$0x1]
        %v232 = vld [vmem:[%s213 + $0x20] sm:$0x1]
        %v233 = vld [vmem:[%s213 + $0x2c] sm:$0x1]
        %v234 = vld [vmem:[%s213 + $0x38] sm:$0x1]
        %v235 = vld [vmem:[%s213 + $0x44] sm:$0x1]
        %v236 = vld [vmem:[%s213 + $0x50] sm:$0x1]
        %v237 = vld [vmem:[%s213 + $0x5c] sm:$0x1]
        %v254 = vunpack.c.l.b16 %v186
        %v255 = vunpack.c.l.b16 %v187
        %v256 = vunpack.c.l.b16 %v188
        %v257 = vunpack.c.l.b16 %v189
        %v258 = vunpack.c.l.b16 %v190
        %v259 = vunpack.c.l.b16 %v191
        %v260 = vunpack.c.l.b16 %v192
        %v261 = vunpack.c.l.b16 %v193
        %v262 = vunpack.c.l.b16 %v194
        %v263 = vunpack.c.l.b16 %v195
        %v264 = vunpack.c.l.b16 %v196
        %v265 = vunpack.c.l.b16 %v197
        %v266 = vunpack.c.l.b16 %v198
        %v267 = vunpack.c.l.b16 %v199
        %v268 = vunpack.c.l.b16 %v200
        %v269 = vunpack.c.l.b16 %v201
        %v270 = vpack.c.b16 %v255, %v254
        %v271 = vpack.c.b16 %v257, %v256
        %v272 = vpack.c.b16 %v259, %v258
        %v273 = vpack.c.b16 %v261, %v260
        %v274 = vpack.c.b16 %v263, %v262
        %v275 = vpack.c.b16 %v265, %v264
        %v276 = vpack.c.b16 %v267, %v266
        %v277 = vpack.c.b16 %v269, %v268
        %v286 = vunpack.c.l.b16 %v202
        %v287 = vunpack.c.l.b16 %v203
        %v288 = vunpack.c.l.b16 %v204
        %v289 = vunpack.c.l.b16 %v205
        %v290 = vunpack.c.l.b16 %v206
        %v291 = vunpack.c.l.b16 %v207
        %v292 = vunpack.c.l.b16 %v208
        %v293 = vunpack.c.l.b16 %v209
        %v294 = vpack.c.b16 %v286, %v286
        %v295 = vpack.c.b16 %v287, %v287
        %v296 = vpack.c.b16 %v288, %v288
        %v297 = vpack.c.b16 %v289, %v289
        %v298 = vpack.c.b16 %v290, %v290
        %v299 = vpack.c.b16 %v291, %v291
        %v300 = vpack.c.b16 %v292, %v292
        %v301 = vpack.c.b16 %v293, %v293
        %vm302 = vsmask.f32 7424
        %v304 = vshrl.u32 %v270, 16
        %v306 = vshll.u32 %v270, 16
        %v308 = vrot.slane %v306, 1
        %v309 = vor.u32 %v304, %v308
        %v311 = vshll.u32 %v294, 16
        %v313 = vrot.slane %v311, 1
        %v314 = vsel %vm302, %v309, %v313
        %v316 = vshrl.u32 %v271, 16
        %v318 = vshll.u32 %v271, 16
        %v320 = vrot.slane %v318, 1
        %v321 = vor.u32 %v316, %v320
        %v323 = vshll.u32 %v295, 16
        %v325 = vrot.slane %v323, 1
        %v326 = vsel %vm302, %v321, %v325
        %v328 = vshrl.u32 %v272, 16
        %v330 = vshll.u32 %v272, 16
        %v332 = vrot.slane %v330, 1
        %v333 = vor.u32 %v328, %v332
        %v335 = vshll.u32 %v296, 16
        %v337 = vrot.slane %v335, 1
        %v338 = vsel %vm302, %v333, %v337
        %v340 = vshrl.u32 %v273, 16
        %v342 = vshll.u32 %v273, 16
        %v344 = vrot.slane %v342, 1
        %v345 = vor.u32 %v340, %v344
        %v347 = vshll.u32 %v297, 16
        %v349 = vrot.slane %v347, 1
        %v350 = vsel %vm302, %v345, %v349
        %v352 = vshrl.u32 %v274, 16
        %v354 = vshll.u32 %v274, 16
        %v356 = vrot.slane %v354, 1
        %v357 = vor.u32 %v352, %v356
        %v359 = vshll.u32 %v298, 16
        %v361 = vrot.slane %v359, 1
        %v362 = vsel %vm302, %v357, %v361
        %v364 = vshrl.u32 %v275, 16
        %v366 = vshll.u32 %v275, 16
        %v368 = vrot.slane %v366, 1
        %v369 = vor.u32 %v364, %v368
        %v371 = vshll.u32 %v299, 16
        %v373 = vrot.slane %v371, 1
        %v374 = vsel %vm302, %v369, %v373
        %v376 = vshrl.u32 %v276, 16
        %v378 = vshll.u32 %v276, 16
        %v380 = vrot.slane %v378, 1
        %v381 = vor.u32 %v376, %v380
        %v383 = vshll.u32 %v300, 16
        %v385 = vrot.slane %v383, 1
        %v386 = vsel %vm302, %v381, %v385
        %v388 = vshrl.u32 %v277, 16
        %v390 = vshll.u32 %v277, 16
        %v392 = vrot.slane %v390, 1
        %v393 = vor.u32 %v388, %v392
        %v395 = vshll.u32 %v301, 16
        %v397 = vrot.slane %v395, 1
        %v398 = vsel %vm302, %v393, %v397
        %399 = vrot.lane.b32.xlu0 %v314, 4
        %v400 = vpop.permute.xlu0 %399
        %401 = vrot.lane.b32.xlu0 %v326, 4
        %v402 = vpop.permute.xlu0 %401
        %403 = vrot.lane.b32.xlu0 %v338, 4
        %v404 = vpop.permute.xlu0 %403
        %405 = vrot.lane.b32.xlu0 %v350, 4
        %v406 = vpop.permute.xlu0 %405
        %407 = vrot.lane.b32.xlu0 %v362, 4
        %v408 = vpop.permute.xlu0 %407
        %409 = vrot.lane.b32.xlu0 %v374, 4
        %v410 = vpop.permute.xlu0 %409
        %411 = vrot.lane.b32.xlu0 %v386, 4
        %v412 = vpop.permute.xlu0 %411
        %413 = vrot.lane.b32.xlu0 %v398, 4
        %v414 = vpop.permute.xlu0 %413
        %v431 = vunpack.c.l.b16 %v214
        %v432 = vunpack.c.l.b16 %v215
        %v433 = vunpack.c.l.b16 %v216
        %v434 = vunpack.c.l.b16 %v217
        %v435 = vunpack.c.l.b16 %v218
        %v436 = vunpack.c.l.b16 %v219
        %v437 = vunpack.c.l.b16 %v220
        %v438 = vunpack.c.l.b16 %v221
        %v439 = vunpack.c.l.b16 %v222
        %v440 = vunpack.c.l.b16 %v223
        %v441 = vunpack.c.l.b16 %v224
        %v442 = vunpack.c.l.b16 %v225
        %v443 = vunpack.c.l.b16 %v226
        %v444 = vunpack.c.l.b16 %v227
        %v445 = vunpack.c.l.b16 %v228
        %v446 = vunpack.c.l.b16 %v229
        %v447 = vpack.c.b16 %v432, %v431
        %v448 = vpack.c.b16 %v434, %v433
        %v449 = vpack.c.b16 %v436, %v435
        %v450 = vpack.c.b16 %v438, %v437
        %v451 = vpack.c.b16 %v440, %v439
        %v452 = vpack.c.b16 %v442, %v441
        %v453 = vpack.c.b16 %v444, %v443
        %v454 = vpack.c.b16 %v446, %v445
        %455 = vrot.lane.b32.xlu0 %v447, 8
        %v456 = vpop.permute.xlu0 %455
        %457 = vrot.lane.b32.xlu0 %v448, 8
        %v458 = vpop.permute.xlu0 %457
        %459 = vrot.lane.b32.xlu0 %v449, 8
        %v460 = vpop.permute.xlu0 %459
        %461 = vrot.lane.b32.xlu0 %v450, 8
        %v462 = vpop.permute.xlu0 %461
        %463 = vrot.lane.b32.xlu0 %v451, 8
        %v464 = vpop.permute.xlu0 %463
        %465 = vrot.lane.b32.xlu0 %v452, 8
        %v466 = vpop.permute.xlu0 %465
        %467 = vrot.lane.b32.xlu0 %v453, 8
        %v468 = vpop.permute.xlu0 %467
        %469 = vrot.lane.b32.xlu0 %v454, 8
        %v470 = vpop.permute.xlu0 %469
        %v479 = vunpack.c.l.b16 %v230
        %v480 = vunpack.c.l.b16 %v231
        %v481 = vunpack.c.l.b16 %v232
        %v482 = vunpack.c.l.b16 %v233
        %v483 = vunpack.c.l.b16 %v234
        %v484 = vunpack.c.l.b16 %v235
        %v485 = vunpack.c.l.b16 %v236
        %v486 = vunpack.c.l.b16 %v237
        %v487 = vpack.c.b16 %v479, %v479
        %v488 = vpack.c.b16 %v480, %v480
        %v489 = vpack.c.b16 %v481, %v481
        %v490 = vpack.c.b16 %v482, %v482
        %v491 = vpack.c.b16 %v483, %v483
        %v492 = vpack.c.b16 %v484, %v484
        %v493 = vpack.c.b16 %v485, %v485
        %v494 = vpack.c.b16 %v486, %v486
        %v496 = vshrl.u32 %v447, 16
        %v498 = vshll.u32 %v447, 16
        %v500 = vrot.slane %v498, 1
        %v501 = vor.u32 %v496, %v500
        %v503 = vshll.u32 %v487, 16
        %v505 = vrot.slane %v503, 1
        %v506 = vsel %vm302, %v501, %v505
        %v508 = vshrl.u32 %v448, 16
        %v510 = vshll.u32 %v448, 16
        %v512 = vrot.slane %v510, 1
        %v513 = vor.u32 %v508, %v512
        %v515 = vshll.u32 %v488, 16
        %v517 = vrot.slane %v515, 1
        %v518 = vsel %vm302, %v513, %v517
        %v520 = vshrl.u32 %v449, 16
        %v522 = vshll.u32 %v449, 16
        %v524 = vrot.slane %v522, 1
        %v525 = vor.u32 %v520, %v524
        %v527 = vshll.u32 %v489, 16
        %v529 = vrot.slane %v527, 1
        %v530 = vsel %vm302, %v525, %v529
        %v532 = vshrl.u32 %v450, 16
        %v534 = vshll.u32 %v450, 16
        %v536 = vrot.slane %v534, 1
        %v537 = vor.u32 %v532, %v536
        %v539 = vshll.u32 %v490, 16
        %v541 = vrot.slane %v539, 1
        %v542 = vsel %vm302, %v537, %v541
        %v544 = vshrl.u32 %v451, 16
        %v546 = vshll.u32 %v451, 16
        %v548 = vrot.slane %v546, 1
        %v549 = vor.u32 %v544, %v548
        %v551 = vshll.u32 %v491, 16
        %v553 = vrot.slane %v551, 1
        %v554 = vsel %vm302, %v549, %v553
        %v556 = vshrl.u32 %v452, 16
        %v558 = vshll.u32 %v452, 16
        %v560 = vrot.slane %v558, 1
        %v561 = vor.u32 %v556, %v560
        %v563 = vshll.u32 %v492, 16
        %v565 = vrot.slane %v563, 1
        %v566 = vsel %vm302, %v561, %v565
        %v568 = vshrl.u32 %v453, 16
        %v570 = vshll.u32 %v453, 16
        %v572 = vrot.slane %v570, 1
        %v573 = vor.u32 %v568, %v572
        %v575 = vshll.u32 %v493, 16
        %v577 = vrot.slane %v575, 1
        %v578 = vsel %vm302, %v573, %v577
        %v580 = vshrl.u32 %v454, 16
        %v582 = vshll.u32 %v454, 16
        %v584 = vrot.slane %v582, 1
        %v585 = vor.u32 %v580, %v584
        %v587 = vshll.u32 %v494, 16
        %v589 = vrot.slane %v587, 1
        %v590 = vsel %vm302, %v585, %v589
        %591 = vrot.lane.b32.xlu0 %v506, 12
        %v592 = vpop.permute.xlu0 %591
        %593 = vrot.lane.b32.xlu0 %v518, 12
        %v594 = vpop.permute.xlu0 %593
        %595 = vrot.lane.b32.xlu0 %v530, 12
        %v596 = vpop.permute.xlu0 %595
        %597 = vrot.lane.b32.xlu0 %v542, 12
        %v598 = vpop.permute.xlu0 %597
        %599 = vrot.lane.b32.xlu0 %v554, 12
        %v600 = vpop.permute.xlu0 %599
        %601 = vrot.lane.b32.xlu0 %v566, 12
        %v602 = vpop.permute.xlu0 %601
        %603 = vrot.lane.b32.xlu0 %v578, 12
        %v604 = vpop.permute.xlu0 %603
        %605 = vrot.lane.b32.xlu0 %v590, 12
        %v606 = vpop.permute.xlu0 %605
        %vm607 = vcmask 31744
        %v609 = vsel %vm607, %v270, %v400
        %v611 = vsel %vm607, %v271, %v402
        %v613 = vsel %vm607, %v272, %v404
        %v615 = vsel %vm607, %v273, %v406
        %v617 = vsel %vm607, %v274, %v408
        %v619 = vsel %vm607, %v275, %v410
        %v621 = vsel %vm607, %v276, %v412
        %v623 = vsel %vm607, %v277, %v414
        %vm624 = vcmask 64512
        %v626 = vsel %vm624, %v609, %v456
        %v628 = vsel %vm624, %v611, %v458
        %v630 = vsel %vm624, %v613, %v460
        %v632 = vsel %vm624, %v615, %v462
        %v634 = vsel %vm624, %v617, %v464
        %v636 = vsel %vm624, %v619, %v466
        %v638 = vsel %vm624, %v621, %v468
        %v640 = vsel %vm624, %v623, %v470
        %vm641 = vcmask 97280
        %v643 = vsel %vm641, %v626, %v592
        %v645 = vsel %vm641, %v628, %v594
        %v647 = vsel %vm641, %v630, %v596
        %v649 = vsel %vm641, %v632, %v598
        %v651 = vsel %vm641, %v634, %v600
        %v653 = vsel %vm641, %v636, %v602
        %v655 = vsel %vm641, %v638, %v604
        %v657 = vsel %vm641, %v640, %v606
        %v658 = vld [vmem:[%s1] sm:$0xf]
        %v659 = vld [vmem:[%s1 + $0x4] sm:$0xf]
        %v661 = vperm.slane %v182, 0
        %v665 = vunpack.c.l.b16 %v658
        %v666 = vunpack.c.l.b16 %v659
        %v667 = vpack.c.b16 %v666, %v665
        %vm669 = vcmask 130048
        %v670 = vsel %vm669, %v643, 0
        %v672 = vsel %vm669, %v645, 0
        %v674 = vsel %vm669, %v647, 0
        %v676 = vsel %vm669, %v649, 0
        %v678 = vsel %vm669, %v651, 0
        %v680 = vsel %vm669, %v653, 0
        %v682 = vsel %vm669, %v655, 0
        %v684 = vsel %vm669, %v657, 0
        %686 = vmatpush.bf16.msra.mxu0 0
        %687 = vmatpush.bf16.msra.mxu0 0
        %688 = vmatpush.bf16.msra.mxu0 0
        %689 = vmatpush.bf16.msra.mxu0 0
        %690 = vmatpush.bf16.msra.mxu0 0
        %691 = vmatpush.bf16.msra.mxu0 0
        %692 = vmatpush.bf16.msra.mxu0 0
        %693 = vmatpush.bf16.msra.mxu0 %v667
        %694 = vmatmul.bf16.gmra.mxu0 %v670
        %v695 = vpop.f32.mrf.mxu0
        %v696 = vadd.f32 %v661, %v695
        %v697 = vpop.f32.mrf.mxu0
        %v698 = vadd.f32 %v661, %v697
        %699 = vmatmul.bf16.gmra.mxu0 %v672
        %v700 = vpop.f32.mrf.mxu0
        %v701 = vadd.f32 %v661, %v700
        %v702 = vpop.f32.mrf.mxu0
        %v703 = vadd.f32 %v661, %v702
        %704 = vmatmul.bf16.gmra.mxu0 %v674
        %v705 = vpop.f32.mrf.mxu0
        %v706 = vadd.f32 %v661, %v705
        %v707 = vpop.f32.mrf.mxu0
        %v708 = vadd.f32 %v661, %v707
        %709 = vmatmul.bf16.gmra.mxu0 %v676
        %v710 = vpop.f32.mrf.mxu0
        %v711 = vadd.f32 %v661, %v710
        %v712 = vpop.f32.mrf.mxu0
        %v713 = vadd.f32 %v661, %v712
        %714 = vmatmul.bf16.gmra.mxu0 %v678
        %v715 = vpop.f32.mrf.mxu0
        %v716 = vadd.f32 %v661, %v715
        %v717 = vpop.f32.mrf.mxu0
        %v718 = vadd.f32 %v661, %v717
        %719 = vmatmul.bf16.gmra.mxu0 %v680
        %v720 = vpop.f32.mrf.mxu0
        %v721 = vadd.f32 %v661, %v720
        %v722 = vpop.f32.mrf.mxu0
        %v723 = vadd.f32 %v661, %v722
        %724 = vmatmul.bf16.gmra.mxu0 %v682
        %v725 = vpop.f32.mrf.mxu0
        %v726 = vadd.f32 %v661, %v725
        %v727 = vpop.f32.mrf.mxu0
        %v728 = vadd.f32 %v661, %v727
        %729 = vmatmul.bf16.gmra.mxu0 %v684
        %v730 = vpop.f32.mrf.mxu0
        %v731 = vadd.f32 %v661, %v730
        %v732 = vpop.f32.mrf.mxu0
        %v733 = vadd.f32 %v661, %v732
        %734 = vdwg.mxu0
        %735 = vst.msk [vmem:[%s173] sm:$0xff] %vm607, %v696
        %736 = vst.msk [vmem:[%s173 + $0x8] sm:$0xff] %vm607, %v698
        %737 = vst.msk [vmem:[%s173 + $0x10] sm:$0xff] %vm607, %v701
        %738 = vst.msk [vmem:[%s173 + $0x18] sm:$0xff] %vm607, %v703
        %739 = vst.msk [vmem:[%s173 + $0x20] sm:$0xff] %vm607, %v706
        %740 = vst.msk [vmem:[%s173 + $0x28] sm:$0xff] %vm607, %v708
        %741 = vst.msk [vmem:[%s173 + $0x30] sm:$0xff] %vm607, %v711
        %742 = vst.msk [vmem:[%s173 + $0x38] sm:$0xff] %vm607, %v713
        %743 = vst.msk [vmem:[%s173 + $0x40] sm:$0xff] %vm607, %v716
        %744 = vst.msk [vmem:[%s173 + $0x48] sm:$0xff] %vm607, %v718
        %745 = vst.msk [vmem:[%s173 + $0x50] sm:$0xff] %vm607, %v721
        %746 = vst.msk [vmem:[%s173 + $0x58] sm:$0xff] %vm607, %v723
        %747 = vst.msk [vmem:[%s173 + $0x60] sm:$0xff] %vm607, %v726
        %748 = vst.msk [vmem:[%s173 + $0x68] sm:$0xff] %vm607, %v728
        %749 = vst.msk [vmem:[%s173 + $0x70] sm:$0xff] %vm607, %v731
        %750 = vst.msk [vmem:[%s173 + $0x78] sm:$0xff] %vm607, %v733
        %v751 = vld [vmem:[%s185] sm:$0xf]
        %v752 = vld [vmem:[%s185 + $0x4] sm:$0xf]
        %v753 = vld [vmem:[%s185 + $0x8] sm:$0x1]
        %v754 = vld [vmem:[%s185 + $0xc] sm:$0xf]
        %v755 = vld [vmem:[%s185 + $0x10] sm:$0xf]
        %v756 = vld [vmem:[%s185 + $0x14] sm:$0x1]
        %v757 = vld [vmem:[%s185 + $0x18] sm:$0xf]
        %v758 = vld [vmem:[%s185 + $0x1c] sm:$0xf]
        %v759 = vld [vmem:[%s185 + $0x20] sm:$0x1]
        %v760 = vld [vmem:[%s185 + $0x24] sm:$0xf]
        %v761 = vld [vmem:[%s185 + $0x28] sm:$0xf]
        %v762 = vld [vmem:[%s185 + $0x2c] sm:$0x1]
        %v763 = vld [vmem:[%s185 + $0x30] sm:$0xf]
        %v764 = vld [vmem:[%s185 + $0x34] sm:$0xf]
        %v765 = vld [vmem:[%s185 + $0x38] sm:$0x1]
        %v766 = vld [vmem:[%s185 + $0x3c] sm:$0xf]
        %v767 = vld [vmem:[%s185 + $0x40] sm:$0xf]
        %v768 = vld [vmem:[%s185 + $0x44] sm:$0x1]
        %v769 = vld [vmem:[%s185 + $0x48] sm:$0xf]
        %v770 = vld [vmem:[%s185 + $0x4c] sm:$0xf]
        %v771 = vld [vmem:[%s185 + $0x50] sm:$0x1]
        %v772 = vld [vmem:[%s185 + $0x54] sm:$0xf]
        %v773 = vld [vmem:[%s185 + $0x58] sm:$0xf]
        %v774 = vld [vmem:[%s185 + $0x5c] sm:$0x1]
        %v775 = vld [vmem:[%s185] sm:$0xe]
        %v776 = vld [vmem:[%s185 + $0xc] sm:$0xe]
        %v777 = vld [vmem:[%s185 + $0x18] sm:$0xe]
        %v778 = vld [vmem:[%s185 + $0x24] sm:$0xe]
        %v779 = vld [vmem:[%s185 + $0x30] sm:$0xe]
        %v780 = vld [vmem:[%s185 + $0x3c] sm:$0xe]
        %v781 = vld [vmem:[%s185 + $0x48] sm:$0xe]
        %v782 = vld [vmem:[%s185 + $0x54] sm:$0xe]
        %v783 = vld [vmem:[%s213] sm:$0xf]
        %v784 = vld [vmem:[%s213 + $0x4] sm:$0xf]
        %v785 = vld [vmem:[%s213 + $0x8] sm:$0x1]
        %v786 = vld [vmem:[%s213 + $0xc] sm:$0xf]
        %v787 = vld [vmem:[%s213 + $0x10] sm:$0xf]
        %v788 = vld [vmem:[%s213 + $0x14] sm:$0x1]
        %v789 = vld [vmem:[%s213 + $0x18] sm:$0xf]
        %v790 = vld [vmem:[%s213 + $0x1c] sm:$0xf]
        %v791 = vld [vmem:[%s213 + $0x20] sm:$0x1]
        %v792 = vld [vmem:[%s213 + $0x24] sm:$0xf]
        %v793 = vld [vmem:[%s213 + $0x28] sm:$0xf]
        %v794 = vld [vmem:[%s213 + $0x2c] sm:$0x1]
        %v795 = vld [vmem:[%s213 + $0x30] sm:$0xf]
        %v796 = vld [vmem:[%s213 + $0x34] sm:$0xf]
        %v797 = vld [vmem:[%s213 + $0x38] sm:$0x1]
        %v798 = vld [vmem:[%s213 + $0x3c] sm:$0xf]
        %v799 = vld [vmem:[%s213 + $0x40] sm:$0xf]
        %v800 = vld [vmem:[%s213 + $0x44] sm:$0x1]
        %v801 = vld [vmem:[%s213 + $0x48] sm:$0xf]
        %v802 = vld [vmem:[%s213 + $0x4c] sm:$0xf]
        %v803 = vld [vmem:[%s213 + $0x50] sm:$0x1]
        %v804 = vld [vmem:[%s213 + $0x54] sm:$0xf]
        %v805 = vld [vmem:[%s213 + $0x58] sm:$0xf]
        %v806 = vld [vmem:[%s213 + $0x5c] sm:$0x1]
        %v807 = vld [vmem:[%s213] sm:$0xe]
        %v808 = vld [vmem:[%s213 + $0xc] sm:$0xe]
        %v809 = vld [vmem:[%s213 + $0x18] sm:$0xe]
        %v810 = vld [vmem:[%s213 + $0x24] sm:$0xe]
        %v811 = vld [vmem:[%s213 + $0x30] sm:$0xe]
        %v812 = vld [vmem:[%s213 + $0x3c] sm:$0xe]
        %v813 = vld [vmem:[%s213 + $0x48] sm:$0xe]
        %v814 = vld [vmem:[%s213 + $0x54] sm:$0xe]
        %v839 = vunpack.c.l.b16 %v751
        %v840 = vunpack.c.l.b16 %v752
        %v841 = vunpack.c.l.b16 %v753
        %v842 = vunpack.c.l.b16 %v754
        %v843 = vunpack.c.l.b16 %v755
        %v844 = vunpack.c.l.b16 %v756
        %v845 = vunpack.c.l.b16 %v757
        %v846 = vunpack.c.l.b16 %v758
        %v847 = vunpack.c.l.b16 %v759
        %v848 = vunpack.c.l.b16 %v760
        %v849 = vunpack.c.l.b16 %v761
        %v850 = vunpack.c.l.b16 %v762
        %v851 = vunpack.c.l.b16 %v763
        %v852 = vunpack.c.l.b16 %v764
        %v853 = vunpack.c.l.b16 %v765
        %v854 = vunpack.c.l.b16 %v766
        %v855 = vunpack.c.l.b16 %v767
        %v856 = vunpack.c.l.b16 %v768
        %v857 = vunpack.c.l.b16 %v769
        %v858 = vunpack.c.l.b16 %v770
        %v859 = vunpack.c.l.b16 %v771
        %v860 = vunpack.c.l.b16 %v772
        %v861 = vunpack.c.l.b16 %v773
        %v862 = vunpack.c.l.b16 %v774
        %v863 = vpack.c.b16 %v840, %v839
        %v864 = vpack.c.b16 %v841, %v841
        %v865 = vpack.c.b16 %v843, %v842
        %v866 = vpack.c.b16 %v844, %v844
        %v867 = vpack.c.b16 %v846, %v845
        %v868 = vpack.c.b16 %v847, %v847
        %v869 = vpack.c.b16 %v849, %v848
        %v870 = vpack.c.b16 %v850, %v850
        %v871 = vpack.c.b16 %v852, %v851
        %v872 = vpack.c.b16 %v853, %v853
        %v873 = vpack.c.b16 %v855, %v854
        %v874 = vpack.c.b16 %v856, %v856
        %v875 = vpack.c.b16 %v858, %v857
        %v876 = vpack.c.b16 %v859, %v859
        %v877 = vpack.c.b16 %v861, %v860
        %v878 = vpack.c.b16 %v862, %v862
        %v887 = vunpack.c.l.b16 %v775
        %v888 = vunpack.c.l.b16 %v776
        %v889 = vunpack.c.l.b16 %v777
        %v890 = vunpack.c.l.b16 %v778
        %v891 = vunpack.c.l.b16 %v779
        %v892 = vunpack.c.l.b16 %v780
        %v893 = vunpack.c.l.b16 %v781
        %v894 = vunpack.c.l.b16 %v782
        %v895 = vpack.c.b16 %v840, %v887
        %v896 = vpack.c.b16 %v843, %v888
        %v897 = vpack.c.b16 %v846, %v889
        %v898 = vpack.c.b16 %v849, %v890
        %v899 = vpack.c.b16 %v852, %v891
        %v900 = vpack.c.b16 %v855, %v892
        %v901 = vpack.c.b16 %v858, %v893
        %v902 = vpack.c.b16 %v861, %v894
        %v904 = vshrl.u32 %v895, 16
        %v906 = vshll.u32 %v895, 16
        %v908 = vrot.slane %v906, 1
        %v909 = vor.u32 %v904, %v908
        %v911 = vshll.u32 %v864, 16
        %v913 = vrot.slane %v911, 1
        %v914 = vsel %vm302, %v909, %v913
        %v915 = vshrl.u32 %v864, 16
        %v918 = vshrl.u32 %v896, 16
        %v920 = vshll.u32 %v896, 16
        %v922 = vrot.slane %v920, 1
        %v923 = vor.u32 %v918, %v922
        %v925 = vshll.u32 %v866, 16
        %v927 = vrot.slane %v925, 1
        %v928 = vsel %vm302, %v923, %v927
        %v929 = vshrl.u32 %v866, 16
        %v932 = vshrl.u32 %v897, 16
        %v934 = vshll.u32 %v897, 16
        %v936 = vrot.slane %v934, 1
        %v937 = vor.u32 %v932, %v936
        %v939 = vshll.u32 %v868, 16
        %v941 = vrot.slane %v939, 1
        %v942 = vsel %vm302, %v937, %v941
        %v943 = vshrl.u32 %v868, 16
        %v946 = vshrl.u32 %v898, 16
        %v948 = vshll.u32 %v898, 16
        %v950 = vrot.slane %v948, 1
        %v951 = vor.u32 %v946, %v950
        %v953 = vshll.u32 %v870, 16
        %v955 = vrot.slane %v953, 1
        %v956 = vsel %vm302, %v951, %v955
        %v957 = vshrl.u32 %v870, 16
        %v960 = vshrl.u32 %v899, 16
        %v962 = vshll.u32 %v899, 16
        %v964 = vrot.slane %v962, 1
        %v965 = vor.u32 %v960, %v964
        %v967 = vshll.u32 %v872, 16
        %v969 = vrot.slane %v967, 1
        %v970 = vsel %vm302, %v965, %v969
        %v971 = vshrl.u32 %v872, 16
        %v974 = vshrl.u32 %v900, 16
        %v976 = vshll.u32 %v900, 16
        %v978 = vrot.slane %v976, 1
        %v979 = vor.u32 %v974, %v978
        %v981 = vshll.u32 %v874, 16
        %v983 = vrot.slane %v981, 1
        %v984 = vsel %vm302, %v979, %v983
        %v985 = vshrl.u32 %v874, 16
        %v988 = vshrl.u32 %v901, 16
        %v990 = vshll.u32 %v901, 16
        %v992 = vrot.slane %v990, 1
        %v993 = vor.u32 %v988, %v992
        %v995 = vshll.u32 %v876, 16
        %v997 = vrot.slane %v995, 1
        %v998 = vsel %vm302, %v993, %v997
        %v999 = vshrl.u32 %v876, 16
        %v1002 = vshrl.u32 %v902, 16
        %v1004 = vshll.u32 %v902, 16
        %v1006 = vrot.slane %v1004, 1
        %v1007 = vor.u32 %v1002, %v1006
        %v1009 = vshll.u32 %v878, 16
        %v1011 = vrot.slane %v1009, 1
        %v1012 = vsel %vm302, %v1007, %v1011
        %v1013 = vshrl.u32 %v878, 16
        %1015 = vrot.lane.b32.xlu0 %v914, 4
        %v1016 = vpop.permute.xlu0 %1015
        %1017 = vrot.lane.b32.xlu0 %v915, 4
        %v1018 = vpop.permute.xlu0 %1017
        %1019 = vrot.lane.b32.xlu0 %v928, 4
        %v1020 = vpop.permute.xlu0 %1019
        %1021 = vrot.lane.b32.xlu0 %v929, 4
        %v1022 = vpop.permute.xlu0 %1021
        %1023 = vrot.lane.b32.xlu0 %v942, 4
        %v1024 = vpop.permute.xlu0 %1023
        %1025 = vrot.lane.b32.xlu0 %v943, 4
        %v1026 = vpop.permute.xlu0 %1025
        %1027 = vrot.lane.b32.xlu0 %v956, 4
        %v1028 = vpop.permute.xlu0 %1027
        %1029 = vrot.lane.b32.xlu0 %v957, 4
        %v1030 = vpop.permute.xlu0 %1029
        %1031 = vrot.lane.b32.xlu0 %v970, 4
        %v1032 = vpop.permute.xlu0 %1031
        %1033 = vrot.lane.b32.xlu0 %v971, 4
        %v1034 = vpop.permute.xlu0 %1033
        %1035 = vrot.lane.b32.xlu0 %v984, 4
        %v1036 = vpop.permute.xlu0 %1035
        %1037 = vrot.lane.b32.xlu0 %v985, 4
        %v1038 = vpop.permute.xlu0 %1037
        %1039 = vrot.lane.b32.xlu0 %v998, 4
        %v1040 = vpop.permute.xlu0 %1039
        %1041 = vrot.lane.b32.xlu0 %v999, 4
        %v1042 = vpop.permute.xlu0 %1041
        %1043 = vrot.lane.b32.xlu0 %v1012, 4
        %v1044 = vpop.permute.xlu0 %1043
        %1045 = vrot.lane.b32.xlu0 %v1013, 4
        %v1046 = vpop.permute.xlu0 %1045
        %v1071 = vunpack.c.l.b16 %v783
        %v1072 = vunpack.c.l.b16 %v784
        %v1073 = vunpack.c.l.b16 %v785
        %v1074 = vunpack.c.l.b16 %v786
        %v1075 = vunpack.c.l.b16 %v787
        %v1076 = vunpack.c.l.b16 %v788
        %v1077 = vunpack.c.l.b16 %v789
        %v1078 = vunpack.c.l.b16 %v790
        %v1079 = vunpack.c.l.b16 %v791
        %v1080 = vunpack.c.l.b16 %v792
        %v1081 = vunpack.c.l.b16 %v793
        %v1082 = vunpack.c.l.b16 %v794
        %v1083 = vunpack.c.l.b16 %v795
        %v1084 = vunpack.c.l.b16 %v796
        %v1085 = vunpack.c.l.b16 %v797
        %v1086 = vunpack.c.l.b16 %v798
        %v1087 = vunpack.c.l.b16 %v799
        %v1088 = vunpack.c.l.b16 %v800
        %v1089 = vunpack.c.l.b16 %v801
        %v1090 = vunpack.c.l.b16 %v802
        %v1091 = vunpack.c.l.b16 %v803
        %v1092 = vunpack.c.l.b16 %v804
        %v1093 = vunpack.c.l.b16 %v805
        %v1094 = vunpack.c.l.b16 %v806
        %v1095 = vpack.c.b16 %v1072, %v1071
        %v1096 = vpack.c.b16 %v1073, %v1073
        %v1097 = vpack.c.b16 %v1075, %v1074
        %v1098 = vpack.c.b16 %v1076, %v1076
        %v1099 = vpack.c.b16 %v1078, %v1077
        %v1100 = vpack.c.b16 %v1079, %v1079
        %v1101 = vpack.c.b16 %v1081, %v1080
        %v1102 = vpack.c.b16 %v1082, %v1082
        %v1103 = vpack.c.b16 %v1084, %v1083
        %v1104 = vpack.c.b16 %v1085, %v1085
        %v1105 = vpack.c.b16 %v1087, %v1086
        %v1106 = vpack.c.b16 %v1088, %v1088
        %v1107 = vpack.c.b16 %v1090, %v1089
        %v1108 = vpack.c.b16 %v1091, %v1091
        %v1109 = vpack.c.b16 %v1093, %v1092
        %v1110 = vpack.c.b16 %v1094, %v1094
        %1111 = vrot.lane.b32.xlu0 %v1095, 8
        %v1112 = vpop.permute.xlu0 %1111
        %1113 = vrot.lane.b32.xlu0 %v1096, 8
        %v1114 = vpop.permute.xlu0 %1113
        %1115 = vrot.lane.b32.xlu0 %v1097, 8
        %v1116 = vpop.permute.xlu0 %1115
        %1117 = vrot.lane.b32.xlu0 %v1098, 8
        %v1118 = vpop.permute.xlu0 %1117
        %1119 = vrot.lane.b32.xlu0 %v1099, 8
        %v1120 = vpop.permute.xlu0 %1119
        %1121 = vrot.lane.b32.xlu0 %v1100, 8
        %v1122 = vpop.permute.xlu0 %1121
        %1123 = vrot.lane.b32.xlu0 %v1101, 8
        %v1124 = vpop.permute.xlu0 %1123
        %1125 = vrot.lane.b32.xlu0 %v1102, 8
        %v1126 = vpop.permute.xlu0 %1125
        %1127 = vrot.lane.b32.xlu0 %v1103, 8
        %v1128 = vpop.permute.xlu0 %1127
        %1129 = vrot.lane.b32.xlu0 %v1104, 8
        %v1130 = vpop.permute.xlu0 %1129
        %1131 = vrot.lane.b32.xlu0 %v1105, 8
        %v1132 = vpop.permute.xlu0 %1131
        %1133 = vrot.lane.b32.xlu0 %v1106, 8
        %v1134 = vpop.permute.xlu0 %1133
        %1135 = vrot.lane.b32.xlu0 %v1107, 8
        %v1136 = vpop.permute.xlu0 %1135
        %1137 = vrot.lane.b32.xlu0 %v1108, 8
        %v1138 = vpop.permute.xlu0 %1137
        %1139 = vrot.lane.b32.xlu0 %v1109, 8
        %v1140 = vpop.permute.xlu0 %1139
        %1141 = vrot.lane.b32.xlu0 %v1110, 8
        %v1142 = vpop.permute.xlu0 %1141
        %v1151 = vunpack.c.l.b16 %v807
        %v1152 = vunpack.c.l.b16 %v808
        %v1153 = vunpack.c.l.b16 %v809
        %v1154 = vunpack.c.l.b16 %v810
        %v1155 = vunpack.c.l.b16 %v811
        %v1156 = vunpack.c.l.b16 %v812
        %v1157 = vunpack.c.l.b16 %v813
        %v1158 = vunpack.c.l.b16 %v814
        %v1159 = vpack.c.b16 %v1072, %v1151
        %v1160 = vpack.c.b16 %v1075, %v1152
        %v1161 = vpack.c.b16 %v1078, %v1153
        %v1162 = vpack.c.b16 %v1081, %v1154
        %v1163 = vpack.c.b16 %v1084, %v1155
        %v1164 = vpack.c.b16 %v1087, %v1156
        %v1165 = vpack.c.b16 %v1090, %v1157
        %v1166 = vpack.c.b16 %v1093, %v1158
        %v1168 = vshrl.u32 %v1159, 16
        %v1170 = vshll.u32 %v1159, 16
        %v1172 = vrot.slane %v1170, 1
        %v1173 = vor.u32 %v1168, %v1172
        %v1175 = vshll.u32 %v1096, 16
        %v1177 = vrot.slane %v1175, 1
        %v1178 = vsel %vm302, %v1173, %v1177
        %v1179 = vshrl.u32 %v1096, 16
        %v1182 = vshrl.u32 %v1160, 16
        %v1184 = vshll.u32 %v1160, 16
        %v1186 = vrot.slane %v1184, 1
        %v1187 = vor.u32 %v1182, %v1186
        %v1189 = vshll.u32 %v1098, 16
        %v1191 = vrot.slane %v1189, 1
        %v1192 = vsel %vm302, %v1187, %v1191
        %v1193 = vshrl.u32 %v1098, 16
        %v1196 = vshrl.u32 %v1161, 16
        %v1198 = vshll.u32 %v1161, 16
        %v1200 = vrot.slane %v1198, 1
        %v1201 = vor.u32 %v1196, %v1200
        %v1203 = vshll.u32 %v1100, 16
        %v1205 = vrot.slane %v1203, 1
        %v1206 = vsel %vm302, %v1201, %v1205
        %v1207 = vshrl.u32 %v1100, 16
        %v1210 = vshrl.u32 %v1162, 16
        %v1212 = vshll.u32 %v1162, 16
        %v1214 = vrot.slane %v1212, 1
        %v1215 = vor.u32 %v1210, %v1214
        %v1217 = vshll.u32 %v1102, 16
        %v1219 = vrot.slane %v1217, 1
        %v1220 = vsel %vm302, %v1215, %v1219
        %v1221 = vshrl.u32 %v1102, 16
        %v1224 = vshrl.u32 %v1163, 16
        %v1226 = vshll.u32 %v1163, 16
        %v1228 = vrot.slane %v1226, 1
        %v1229 = vor.u32 %v1224, %v1228
        %v1231 = vshll.u32 %v1104, 16
        %v1233 = vrot.slane %v1231, 1
        %v1234 = vsel %vm302, %v1229, %v1233
        %v1235 = vshrl.u32 %v1104, 16
        %v1238 = vshrl.u32 %v1164, 16
        %v1240 = vshll.u32 %v1164, 16
        %v1242 = vrot.slane %v1240, 1
        %v1243 = vor.u32 %v1238, %v1242
        %v1245 = vshll.u32 %v1106, 16
        %v1247 = vrot.slane %v1245, 1
        %v1248 = vsel %vm302, %v1243, %v1247
        %v1249 = vshrl.u32 %v1106, 16
        %v1252 = vshrl.u32 %v1165, 16
        %v1254 = vshll.u32 %v1165, 16
        %v1256 = vrot.slane %v1254, 1
        %v1257 = vor.u32 %v1252, %v1256
        %v1259 = vshll.u32 %v1108, 16
        %v1261 = vrot.slane %v1259, 1
        %v1262 = vsel %vm302, %v1257, %v1261
        %v1263 = vshrl.u32 %v1108, 16
        %v1266 = vshrl.u32 %v1166, 16
        %v1268 = vshll.u32 %v1166, 16
        %v1270 = vrot.slane %v1268, 1
        %v1271 = vor.u32 %v1266, %v1270
        %v1273 = vshll.u32 %v1110, 16
        %v1275 = vrot.slane %v1273, 1
        %v1276 = vsel %vm302, %v1271, %v1275
        %v1277 = vshrl.u32 %v1110, 16
        %1279 = vrot.lane.b32.xlu0 %v1178, 12
        %v1280 = vpop.permute.xlu0 %1279
        %1281 = vrot.lane.b32.xlu0 %v1179, 12
        %v1282 = vpop.permute.xlu0 %1281
        %1283 = vrot.lane.b32.xlu0 %v1192, 12
        %v1284 = vpop.permute.xlu0 %1283
        %1285 = vrot.lane.b32.xlu0 %v1193, 12
        %v1286 = vpop.permute.xlu0 %1285
        %1287 = vrot.lane.b32.xlu0 %v1206, 12
        %v1288 = vpop.permute.xlu0 %1287
        %1289 = vrot.lane.b32.xlu0 %v1207, 12
        %v1290 = vpop.permute.xlu0 %1289
        %1291 = vrot.lane.b32.xlu0 %v1220, 12
        %v1292 = vpop.permute.xlu0 %1291
        %1293 = vrot.lane.b32.xlu0 %v1221, 12
        %v1294 = vpop.permute.xlu0 %1293
        %1295 = vrot.lane.b32.xlu0 %v1234, 12
        %v1296 = vpop.permute.xlu0 %1295
        %1297 = vrot.lane.b32.xlu0 %v1235, 12
        %v1298 = vpop.permute.xlu0 %1297
        %1299 = vrot.lane.b32.xlu0 %v1248, 12
        %v1300 = vpop.permute.xlu0 %1299
        %1301 = vrot.lane.b32.xlu0 %v1249, 12
        %v1302 = vpop.permute.xlu0 %1301
        %1303 = vrot.lane.b32.xlu0 %v1262, 12
        %v1304 = vpop.permute.xlu0 %1303
        %1305 = vrot.lane.b32.xlu0 %v1263, 12
        %v1306 = vpop.permute.xlu0 %1305
        %1307 = vrot.lane.b32.xlu0 %v1276, 12
        %v1308 = vpop.permute.xlu0 %1307
        %1309 = vrot.lane.b32.xlu0 %v1277, 12
        %v1310 = vpop.permute.xlu0 %1309
        %v1313 = vsel %vm607, %v863, %v1016
        %v1315 = vsel %vm607, %v864, %v1018
        %v1318 = vsel %vm607, %v865, %v1020
        %v1320 = vsel %vm607, %v866, %v1022
        %v1323 = vsel %vm607, %v867, %v1024
        %v1325 = vsel %vm607, %v868, %v1026
        %v1328 = vsel %vm607, %v869, %v1028
        %v1330 = vsel %vm607, %v870, %v1030
        %v1333 = vsel %vm607, %v871, %v1032
        %v1335 = vsel %vm607, %v872, %v1034
        %v1338 = vsel %vm607, %v873, %v1036
        %v1340 = vsel %vm607, %v874, %v1038
        %v1343 = vsel %vm607, %v875, %v1040
        %v1345 = vsel %vm607, %v876, %v1042
        %v1348 = vsel %vm607, %v877, %v1044
        %v1350 = vsel %vm607, %v878, %v1046
        %v1352 = vsel %vm624, %v1313, %v1112
        %v1354 = vsel %vm624, %v1315, %v1114
        %v1356 = vsel %vm624, %v1318, %v1116
        %v1358 = vsel %vm624, %v1320, %v1118
        %v1360 = vsel %vm624, %v1323, %v1120
        %v1362 = vsel %vm624, %v1325, %v1122
        %v1364 = vsel %vm624, %v1328, %v1124
        %v1366 = vsel %vm624, %v1330, %v1126
        %v1368 = vsel %vm624, %v1333, %v1128
        %v1370 = vsel %vm624, %v1335, %v1130
        %v1372 = vsel %vm624, %v1338, %v1132
        %v1374 = vsel %vm624, %v1340, %v1134
        %v1376 = vsel %vm624, %v1343, %v1136
        %v1378 = vsel %vm624, %v1345, %v1138
        %v1380 = vsel %vm624, %v1348, %v1140
        %v1382 = vsel %vm624, %v1350, %v1142
        %v1384 = vsel %vm641, %v1352, %v1280
        %v1386 = vsel %vm641, %v1354, %v1282
        %v1388 = vsel %vm641, %v1356, %v1284
        %v1390 = vsel %vm641, %v1358, %v1286
        %v1392 = vsel %vm641, %v1360, %v1288
        %v1394 = vsel %vm641, %v1362, %v1290
        %v1396 = vsel %vm641, %v1364, %v1292
        %v1398 = vsel %vm641, %v1366, %v1294
        %v1400 = vsel %vm641, %v1368, %v1296
        %v1402 = vsel %vm641, %v1370, %v1298
        %v1404 = vsel %vm641, %v1372, %v1300
        %v1406 = vsel %vm641, %v1374, %v1302
        %v1408 = vsel %vm641, %v1376, %v1304
        %v1410 = vsel %vm641, %v1378, %v1306
        %v1412 = vsel %vm641, %v1380, %v1308
        %v1414 = vsel %vm641, %v1382, %v1310
        %v1415 = vshrl.u32 %v1384, 16
        %v1417 = vshll.u32 %v1384, 16
        %v1419 = vrot.slane %v1417, 1
        %v1420 = vor.u32 %v1415, %v1419
        %v1421 = vshll.u32 %v1386, 16
        %v1423 = vrot.slane %v1421, 1
        %v1424 = vsel %vm302, %v1420, %v1423
        %v1425 = vshrl.u32 %v1388, 16
        %v1427 = vshll.u32 %v1388, 16
        %v1429 = vrot.slane %v1427, 1
        %v1430 = vor.u32 %v1425, %v1429
        %v1431 = vshll.u32 %v1390, 16
        %v1433 = vrot.slane %v1431, 1
        %v1434 = vsel %vm302, %v1430, %v1433
        %v1435 = vshrl.u32 %v1392, 16
        %v1437 = vshll.u32 %v1392, 16
        %v1439 = vrot.slane %v1437, 1
        %v1440 = vor.u32 %v1435, %v1439
        %v1441 = vshll.u32 %v1394, 16
        %v1443 = vrot.slane %v1441, 1
        %v1444 = vsel %vm302, %v1440, %v1443
        %v1445 = vshrl.u32 %v1396, 16
        %v1447 = vshll.u32 %v1396, 16
        %v1449 = vrot.slane %v1447, 1
        %v1450 = vor.u32 %v1445, %v1449
        %v1451 = vshll.u32 %v1398, 16
        %v1453 = vrot.slane %v1451, 1
        %v1454 = vsel %vm302, %v1450, %v1453
        %v1455 = vshrl.u32 %v1400, 16
        %v1457 = vshll.u32 %v1400, 16
        %v1459 = vrot.slane %v1457, 1
        %v1460 = vor.u32 %v1455, %v1459
        %v1461 = vshll.u32 %v1402, 16
        %v1463 = vrot.slane %v1461, 1
        %v1464 = vsel %vm302, %v1460, %v1463
        %v1465 = vshrl.u32 %v1404, 16
        %v1467 = vshll.u32 %v1404, 16
        %v1469 = vrot.slane %v1467, 1
        %v1470 = vor.u32 %v1465, %v1469
        %v1471 = vshll.u32 %v1406, 16
        %v1473 = vrot.slane %v1471, 1
        %v1474 = vsel %vm302, %v1470, %v1473
        %v1475 = vshrl.u32 %v1408, 16
        %v1477 = vshll.u32 %v1408, 16
        %v1479 = vrot.slane %v1477, 1
        %v1480 = vor.u32 %v1475, %v1479
        %v1481 = vshll.u32 %v1410, 16
        %v1483 = vrot.slane %v1481, 1
        %v1484 = vsel %vm302, %v1480, %v1483
        %v1485 = vshrl.u32 %v1412, 16
        %v1487 = vshll.u32 %v1412, 16
        %v1489 = vrot.slane %v1487, 1
        %v1490 = vor.u32 %v1485, %v1489
        %v1491 = vshll.u32 %v1414, 16
        %v1493 = vrot.slane %v1491, 1
        %v1494 = vsel %vm302, %v1490, %v1493
        %s1495 = scalar_lea.vmem %s1, 8
        %v1496 = vld [vmem:[%s1495] sm:$0xf]
        %v1497 = vld [vmem:[%s1495 + $0x4] sm:$0xf]
        %v1500 = vunpack.c.l.b16 %v1496
        %v1501 = vunpack.c.l.b16 %v1497
        %v1502 = vpack.c.b16 %v1501, %v1500
        %v1505 = vsel %vm669, %v1424, 0
        %v1508 = vsel %vm669, %v1434, 0
        %v1511 = vsel %vm669, %v1444, 0
        %v1514 = vsel %vm669, %v1454, 0
        %v1517 = vsel %vm669, %v1464, 0
        %v1520 = vsel %vm669, %v1474, 0
        %v1523 = vsel %vm669, %v1484, 0
        %v1526 = vsel %vm669, %v1494, 0
        %1528 = vmatpush.bf16.msra.mxu0 0
        %1529 = vmatpush.bf16.msra.mxu0 0
        %1530 = vmatpush.bf16.msra.mxu0 0
        %1531 = vmatpush.bf16.msra.mxu0 0
        %1532 = vmatpush.bf16.msra.mxu0 0
        %1533 = vmatpush.bf16.msra.mxu0 0
        %1534 = vmatpush.bf16.msra.mxu0 0
        %1535 = vmatpush.bf16.msra.mxu0 %v1502
        %1536 = vmatmul.bf16.gmra.mxu0 %v1505
        %v1537 = vpop.f32.mrf.mxu0
        %v1538 = vadd.f32 %v661, %v1537
        %v1539 = vpop.f32.mrf.mxu0
        %v1540 = vadd.f32 %v661, %v1539
        %1541 = vmatmul.bf16.gmra.mxu0 %v1508
        %v1542 = vpop.f32.mrf.mxu0
        %v1543 = vadd.f32 %v661, %v1542
        %v1544 = vpop.f32.mrf.mxu0
        %v1545 = vadd.f32 %v661, %v1544
        %1546 = vmatmul.bf16.gmra.mxu0 %v1511
        %v1547 = vpop.f32.mrf.mxu0
        %v1548 = vadd.f32 %v661, %v1547
        %v1549 = vpop.f32.mrf.mxu0
        %v1550 = vadd.f32 %v661, %v1549
        %1551 = vmatmul.bf16.gmra.mxu0 %v1514
        %v1552 = vpop.f32.mrf.mxu0
        %v1553 = vadd.f32 %v661, %v1552
        %v1554 = vpop.f32.mrf.mxu0
        %v1555 = vadd.f32 %v661, %v1554
        %1556 = vmatmul.bf16.gmra.mxu0 %v1517
        %v1557 = vpop.f32.mrf.mxu0
        %v1558 = vadd.f32 %v661, %v1557
        %v1559 = vpop.f32.mrf.mxu0
        %v1560 = vadd.f32 %v661, %v1559
        %1561 = vmatmul.bf16.gmra.mxu0 %v1520
        %v1562 = vpop.f32.mrf.mxu0
        %v1563 = vadd.f32 %v661, %v1562
        %v1564 = vpop.f32.mrf.mxu0
        %v1565 = vadd.f32 %v661, %v1564
        %1566 = vmatmul.bf16.gmra.mxu0 %v1523
        %v1567 = vpop.f32.mrf.mxu0
        %v1568 = vadd.f32 %v661, %v1567
        %v1569 = vpop.f32.mrf.mxu0
        %v1570 = vadd.f32 %v661, %v1569
        %1571 = vmatmul.bf16.gmra.mxu0 %v1526
        %v1572 = vpop.f32.mrf.mxu0
        %v1573 = vadd.f32 %v661, %v1572
        %v1574 = vpop.f32.mrf.mxu0
        %v1575 = vadd.f32 %v661, %v1574
        %1576 = vdwg.mxu0
        %s1577 = scalar_lea.vmem %s173, 128 [#allocation2]
        %1578 = vst.msk [vmem:[%s1577] sm:$0xff] %vm607, %v1538
        %1579 = vst.msk [vmem:[%s1577 + $0x8] sm:$0xff] %vm607, %v1540
        %1580 = vst.msk [vmem:[%s1577 + $0x10] sm:$0xff] %vm607, %v1543
        %1581 = vst.msk [vmem:[%s1577 + $0x18] sm:$0xff] %vm607, %v1545
        %1582 = vst.msk [vmem:[%s1577 + $0x20] sm:$0xff] %vm607, %v1548
        %1583 = vst.msk [vmem:[%s1577 + $0x28] sm:$0xff] %vm607, %v1550
        %1584 = vst.msk [vmem:[%s1577 + $0x30] sm:$0xff] %vm607, %v1553
        %1585 = vst.msk [vmem:[%s1577 + $0x38] sm:$0xff] %vm607, %v1555
        %1586 = vst.msk [vmem:[%s1577 + $0x40] sm:$0xff] %vm607, %v1558
        %1587 = vst.msk [vmem:[%s1577 + $0x48] sm:$0xff] %vm607, %v1560
        %1588 = vst.msk [vmem:[%s1577 + $0x50] sm:$0xff] %vm607, %v1563
        %1589 = vst.msk [vmem:[%s1577 + $0x58] sm:$0xff] %vm607, %v1565
        %1590 = vst.msk [vmem:[%s1577 + $0x60] sm:$0xff] %vm607, %v1568
        %1591 = vst.msk [vmem:[%s1577 + $0x68] sm:$0xff] %vm607, %v1570
        %1592 = vst.msk [vmem:[%s1577 + $0x70] sm:$0xff] %vm607, %v1573
        %1593 = vst.msk [vmem:[%s1577 + $0x78] sm:$0xff] %vm607, %v1575
        %v1594 = vld [vmem:[%s213] sm:$0xf]
        %v1595 = vld [vmem:[%s213 + $0x4] sm:$0xf]
        %v1596 = vld [vmem:[%s213 + $0xc] sm:$0xf]
        %v1597 = vld [vmem:[%s213 + $0x10] sm:$0xf]
        %v1598 = vld [vmem:[%s213 + $0x18] sm:$0xf]
        %v1599 = vld [vmem:[%s213 + $0x1c] sm:$0xf]
        %v1600 = vld [vmem:[%s213 + $0x24] sm:$0xf]
        %v1601 = vld [vmem:[%s213 + $0x28] sm:$0xf]
        %v1602 = vld [vmem:[%s213 + $0x30] sm:$0xf]
        %v1603 = vld [vmem:[%s213 + $0x34] sm:$0xf]
        %v1604 = vld [vmem:[%s213 + $0x3c] sm:$0xf]
        %v1605 = vld [vmem:[%s213 + $0x40] sm:$0xf]
        %v1606 = vld [vmem:[%s213 + $0x48] sm:$0xf]
        %v1607 = vld [vmem:[%s213 + $0x4c] sm:$0xf]
        %v1608 = vld [vmem:[%s213 + $0x54] sm:$0xf]
        %v1609 = vld [vmem:[%s213 + $0x58] sm:$0xf]
        %v1610 = vld [vmem:[%s213 + $0x8] sm:$0x1]
        %v1611 = vld [vmem:[%s213 + $0x14] sm:$0x1]
        %v1612 = vld [vmem:[%s213 + $0x20] sm:$0x1]
        %v1613 = vld [vmem:[%s213 + $0x2c] sm:$0x1]
        %v1614 = vld [vmem:[%s213 + $0x38] sm:$0x1]
        %v1615 = vld [vmem:[%s213 + $0x44] sm:$0x1]
        %v1616 = vld [vmem:[%s213 + $0x50] sm:$0x1]
        %v1617 = vld [vmem:[%s213 + $0x5c] sm:$0x1]
        %s1618 = sadd.s32 %s181, 2
        %s1619 = smul.u32 %s1618, 3
        %s1620 = smul.addr %s1619, 4
        %s1621 = scalar_lea.vmem %s178, %s1620
        %v1622 = vld [vmem:[%s1621] sm:$0xf]
        %v1623 = vld [vmem:[%s1621 + $0x4] sm:$0xf]
        %v1624 = vld [vmem:[%s1621 + $0xc] sm:$0xf]
        %v1625 = vld [vmem:[%s1621 + $0x10] sm:$0xf]
        %v1626 = vld [vmem:[%s1621 + $0x18] sm:$0xf]
        %v1627 = vld [vmem:[%s1621 + $0x1c] sm:$0xf]
        %v1628 = vld [vmem:[%s1621 + $0x24] sm:$0xf]
        %v1629 = vld [vmem:[%s1621 + $0x28] sm:$0xf]
        %v1630 = vld [vmem:[%s1621 + $0x30] sm:$0xf]
        %v1631 = vld [vmem:[%s1621 + $0x34] sm:$0xf]
        %v1632 = vld [vmem:[%s1621 + $0x3c] sm:$0xf]
        %v1633 = vld [vmem:[%s1621 + $0x40] sm:$0xf]
        %v1634 = vld [vmem:[%s1621 + $0x48] sm:$0xf]
        %v1635 = vld [vmem:[%s1621 + $0x4c] sm:$0xf]
        %v1636 = vld [vmem:[%s1621 + $0x54] sm:$0xf]
        %v1637 = vld [vmem:[%s1621 + $0x58] sm:$0xf]
        %v1638 = vld [vmem:[%s1621 + $0x8] sm:$0x1]
        %v1639 = vld [vmem:[%s1621 + $0x14] sm:$0x1]
        %v1640 = vld [vmem:[%s1621 + $0x20] sm:$0x1]
        %v1641 = vld [vmem:[%s1621 + $0x2c] sm:$0x1]
        %v1642 = vld [vmem:[%s1621 + $0x38] sm:$0x1]
        %v1643 = vld [vmem:[%s1621 + $0x44] sm:$0x1]
        %v1644 = vld [vmem:[%s1621 + $0x50] sm:$0x1]
        %v1645 = vld [vmem:[%s1621 + $0x5c] sm:$0x1]
        %v1662 = vunpack.c.l.b16 %v1594
        %v1663 = vunpack.c.l.b16 %v1595
        %v1664 = vunpack.c.l.b16 %v1596
        %v1665 = vunpack.c.l.b16 %v1597
        %v1666 = vunpack.c.l.b16 %v1598
        %v1667 = vunpack.c.l.b16 %v1599
        %v1668 = vunpack.c.l.b16 %v1600
        %v1669 = vunpack.c.l.b16 %v1601
        %v1670 = vunpack.c.l.b16 %v1602
        %v1671 = vunpack.c.l.b16 %v1603
        %v1672 = vunpack.c.l.b16 %v1604
        %v1673 = vunpack.c.l.b16 %v1605
        %v1674 = vunpack.c.l.b16 %v1606
        %v1675 = vunpack.c.l.b16 %v1607
        %v1676 = vunpack.c.l.b16 %v1608
        %v1677 = vunpack.c.l.b16 %v1609
        %v1678 = vpack.c.b16 %v1663, %v1662
        %v1679 = vpack.c.b16 %v1665, %v1664
        %v1680 = vpack.c.b16 %v1667, %v1666
        %v1681 = vpack.c.b16 %v1669, %v1668
        %v1682 = vpack.c.b16 %v1671, %v1670
        %v1683 = vpack.c.b16 %v1673, %v1672
        %v1684 = vpack.c.b16 %v1675, %v1674
        %v1685 = vpack.c.b16 %v1677, %v1676
        %v1694 = vunpack.c.l.b16 %v1610
        %v1695 = vunpack.c.l.b16 %v1611
        %v1696 = vunpack.c.l.b16 %v1612
        %v1697 = vunpack.c.l.b16 %v1613
        %v1698 = vunpack.c.l.b16 %v1614
        %v1699 = vunpack.c.l.b16 %v1615
        %v1700 = vunpack.c.l.b16 %v1616
        %v1701 = vunpack.c.l.b16 %v1617
        %v1702 = vpack.c.b16 %v1694, %v1694
        %v1703 = vpack.c.b16 %v1695, %v1695
        %v1704 = vpack.c.b16 %v1696, %v1696
        %v1705 = vpack.c.b16 %v1697, %v1697
        %v1706 = vpack.c.b16 %v1698, %v1698
        %v1707 = vpack.c.b16 %v1699, %v1699
        %v1708 = vpack.c.b16 %v1700, %v1700
        %v1709 = vpack.c.b16 %v1701, %v1701
        %v1711 = vshrl.u32 %v1678, 16
        %v1713 = vshll.u32 %v1678, 16
        %v1715 = vrot.slane %v1713, 1
        %v1716 = vor.u32 %v1711, %v1715
        %v1718 = vshll.u32 %v1702, 16
        %v1720 = vrot.slane %v1718, 1
        %v1721 = vsel %vm302, %v1716, %v1720
        %v1723 = vshrl.u32 %v1679, 16
        %v1725 = vshll.u32 %v1679, 16
        %v1727 = vrot.slane %v1725, 1
        %v1728 = vor.u32 %v1723, %v1727
        %v1730 = vshll.u32 %v1703, 16
        %v1732 = vrot.slane %v1730, 1
        %v1733 = vsel %vm302, %v1728, %v1732
        %v1735 = vshrl.u32 %v1680, 16
        %v1737 = vshll.u32 %v1680, 16
        %v1739 = vrot.slane %v1737, 1
        %v1740 = vor.u32 %v1735, %v1739
        %v1742 = vshll.u32 %v1704, 16
        %v1744 = vrot.slane %v1742, 1
        %v1745 = vsel %vm302, %v1740, %v1744
        %v1747 = vshrl.u32 %v1681, 16
        %v1749 = vshll.u32 %v1681, 16
        %v1751 = vrot.slane %v1749, 1
        %v1752 = vor.u32 %v1747, %v1751
        %v1754 = vshll.u32 %v1705, 16
        %v1756 = vrot.slane %v1754, 1
        %v1757 = vsel %vm302, %v1752, %v1756
        %v1759 = vshrl.u32 %v1682, 16
        %v1761 = vshll.u32 %v1682, 16
        %v1763 = vrot.slane %v1761, 1
        %v1764 = vor.u32 %v1759, %v1763
        %v1766 = vshll.u32 %v1706, 16
        %v1768 = vrot.slane %v1766, 1
        %v1769 = vsel %vm302, %v1764, %v1768
        %v1771 = vshrl.u32 %v1683, 16
        %v1773 = vshll.u32 %v1683, 16
        %v1775 = vrot.slane %v1773, 1
        %v1776 = vor.u32 %v1771, %v1775
        %v1778 = vshll.u32 %v1707, 16
        %v1780 = vrot.slane %v1778, 1
        %v1781 = vsel %vm302, %v1776, %v1780
        %v1783 = vshrl.u32 %v1684, 16
        %v1785 = vshll.u32 %v1684, 16
        %v1787 = vrot.slane %v1785, 1
        %v1788 = vor.u32 %v1783, %v1787
        %v1790 = vshll.u32 %v1708, 16
        %v1792 = vrot.slane %v1790, 1
        %v1793 = vsel %vm302, %v1788, %v1792
        %v1795 = vshrl.u32 %v1685, 16
        %v1797 = vshll.u32 %v1685, 16
        %v1799 = vrot.slane %v1797, 1
        %v1800 = vor.u32 %v1795, %v1799
        %v1802 = vshll.u32 %v1709, 16
        %v1804 = vrot.slane %v1802, 1
        %v1805 = vsel %vm302, %v1800, %v1804
        %1806 = vrot.lane.b32.xlu0 %v1721, 4
        %v1807 = vpop.permute.xlu0 %1806
        %1808 = vrot.lane.b32.xlu0 %v1733, 4
        %v1809 = vpop.permute.xlu0 %1808
        %1810 = vrot.lane.b32.xlu0 %v1745, 4
        %v1811 = vpop.permute.xlu0 %1810
        %1812 = vrot.lane.b32.xlu0 %v1757, 4
        %v1813 = vpop.permute.xlu0 %1812
        %1814 = vrot.lane.b32.xlu0 %v1769, 4
        %v1815 = vpop.permute.xlu0 %1814
        %1816 = vrot.lane.b32.xlu0 %v1781, 4
        %v1817 = vpop.permute.xlu0 %1816
        %1818 = vrot.lane.b32.xlu0 %v1793, 4
        %v1819 = vpop.permute.xlu0 %1818
        %1820 = vrot.lane.b32.xlu0 %v1805, 4
        %v1821 = vpop.permute.xlu0 %1820
        %v1838 = vunpack.c.l.b16 %v1622
        %v1839 = vunpack.c.l.b16 %v1623
        %v1840 = vunpack.c.l.b16 %v1624
        %v1841 = vunpack.c.l.b16 %v1625
        %v1842 = vunpack.c.l.b16 %v1626
        %v1843 = vunpack.c.l.b16 %v1627
        %v1844 = vunpack.c.l.b16 %v1628
        %v1845 = vunpack.c.l.b16 %v1629
        %v1846 = vunpack.c.l.b16 %v1630
        %v1847 = vunpack.c.l.b16 %v1631
        %v1848 = vunpack.c.l.b16 %v1632
        %v1849 = vunpack.c.l.b16 %v1633
        %v1850 = vunpack.c.l.b16 %v1634
        %v1851 = vunpack.c.l.b16 %v1635
        %v1852 = vunpack.c.l.b16 %v1636
        %v1853 = vunpack.c.l.b16 %v1637
        %v1854 = vpack.c.b16 %v1839, %v1838
        %v1855 = vpack.c.b16 %v1841, %v1840
        %v1856 = vpack.c.b16 %v1843, %v1842
        %v1857 = vpack.c.b16 %v1845, %v1844
        %v1858 = vpack.c.b16 %v1847, %v1846
        %v1859 = vpack.c.b16 %v1849, %v1848
        %v1860 = vpack.c.b16 %v1851, %v1850
        %v1861 = vpack.c.b16 %v1853, %v1852
        %1862 = vrot.lane.b32.xlu0 %v1854, 8
        %v1863 = vpop.permute.xlu0 %1862
        %1864 = vrot.lane.b32.xlu0 %v1855, 8
        %v1865 = vpop.permute.xlu0 %1864
        %1866 = vrot.lane.b32.xlu0 %v1856, 8
        %v1867 = vpop.permute.xlu0 %1866
        %1868 = vrot.lane.b32.xlu0 %v1857, 8
        %v1869 = vpop.permute.xlu0 %1868
        %1870 = vrot.lane.b32.xlu0 %v1858, 8
        %v1871 = vpop.permute.xlu0 %1870
        %1872 = vrot.lane.b32.xlu0 %v1859, 8
        %v1873 = vpop.permute.xlu0 %1872
        %1874 = vrot.lane.b32.xlu0 %v1860, 8
        %v1875 = vpop.permute.xlu0 %1874
        %1876 = vrot.lane.b32.xlu0 %v1861, 8
        %v1877 = vpop.permute.xlu0 %1876
        %v1886 = vunpack.c.l.b16 %v1638
        %v1887 = vunpack.c.l.b16 %v1639
        %v1888 = vunpack.c.l.b16 %v1640
        %v1889 = vunpack.c.l.b16 %v1641
        %v1890 = vunpack.c.l.b16 %v1642
        %v1891 = vunpack.c.l.b16 %v1643
        %v1892 = vunpack.c.l.b16 %v1644
        %v1893 = vunpack.c.l.b16 %v1645
        %v1894 = vpack.c.b16 %v1886, %v1886
        %v1895 = vpack.c.b16 %v1887, %v1887
        %v1896 = vpack.c.b16 %v1888, %v1888
        %v1897 = vpack.c.b16 %v1889, %v1889
        %v1898 = vpack.c.b16 %v1890, %v1890
        %v1899 = vpack.c.b16 %v1891, %v1891
        %v1900 = vpack.c.b16 %v1892, %v1892
        %v1901 = vpack.c.b16 %v1893, %v1893
        %v1903 = vshrl.u32 %v1854, 16
        %v1905 = vshll.u32 %v1854, 16
        %v1907 = vrot.slane %v1905, 1
        %v1908 = vor.u32 %v1903, %v1907
        %v1910 = vshll.u32 %v1894, 16
        %v1912 = vrot.slane %v1910, 1
        %v1913 = vsel %vm302, %v1908, %v1912
        %v1915 = vshrl.u32 %v1855, 16
        %v1917 = vshll.u32 %v1855, 16
        %v1919 = vrot.slane %v1917, 1
        %v1920 = vor.u32 %v1915, %v1919
        %v1922 = vshll.u32 %v1895, 16
        %v1924 = vrot.slane %v1922, 1
        %v1925 = vsel %vm302, %v1920, %v1924
        %v1927 = vshrl.u32 %v1856, 16
        %v1929 = vshll.u32 %v1856, 16
        %v1931 = vrot.slane %v1929, 1
        %v1932 = vor.u32 %v1927, %v1931
        %v1934 = vshll.u32 %v1896, 16
        %v1936 = vrot.slane %v1934, 1
        %v1937 = vsel %vm302, %v1932, %v1936
        %v1939 = vshrl.u32 %v1857, 16
        %v1941 = vshll.u32 %v1857, 16
        %v1943 = vrot.slane %v1941, 1
        %v1944 = vor.u32 %v1939, %v1943
        %v1946 = vshll.u32 %v1897, 16
        %v1948 = vrot.slane %v1946, 1
        %v1949 = vsel %vm302, %v1944, %v1948
        %v1951 = vshrl.u32 %v1858, 16
        %v1953 = vshll.u32 %v1858, 16
        %v1955 = vrot.slane %v1953, 1
        %v1956 = vor.u32 %v1951, %v1955
        %v1958 = vshll.u32 %v1898, 16
        %v1960 = vrot.slane %v1958, 1
        %v1961 = vsel %vm302, %v1956, %v1960
        %v1963 = vshrl.u32 %v1859, 16
        %v1965 = vshll.u32 %v1859, 16
        %v1967 = vrot.slane %v1965, 1
        %v1968 = vor.u32 %v1963, %v1967
        %v1970 = vshll.u32 %v1899, 16
        %v1972 = vrot.slane %v1970, 1
        %v1973 = vsel %vm302, %v1968, %v1972
        %v1975 = vshrl.u32 %v1860, 16
        %v1977 = vshll.u32 %v1860, 16
        %v1979 = vrot.slane %v1977, 1
        %v1980 = vor.u32 %v1975, %v1979
        %v1982 = vshll.u32 %v1900, 16
        %v1984 = vrot.slane %v1982, 1
        %v1985 = vsel %vm302, %v1980, %v1984
        %v1987 = vshrl.u32 %v1861, 16
        %v1989 = vshll.u32 %v1861, 16
        %v1991 = vrot.slane %v1989, 1
        %v1992 = vor.u32 %v1987, %v1991
        %v1994 = vshll.u32 %v1901, 16
        %v1996 = vrot.slane %v1994, 1
        %v1997 = vsel %vm302, %v1992, %v1996
        %1998 = vrot.lane.b32.xlu0 %v1913, 12
        %v1999 = vpop.permute.xlu0 %1998
        %2000 = vrot.lane.b32.xlu0 %v1925, 12
        %v2001 = vpop.permute.xlu0 %2000
        %2002 = vrot.lane.b32.xlu0 %v1937, 12
        %v2003 = vpop.permute.xlu0 %2002
        %2004 = vrot.lane.b32.xlu0 %v1949, 12
        %v2005 = vpop.permute.xlu0 %2004
        %2006 = vrot.lane.b32.xlu0 %v1961, 12
        %v2007 = vpop.permute.xlu0 %2006
        %2008 = vrot.lane.b32.xlu0 %v1973, 12
        %v2009 = vpop.permute.xlu0 %2008
        %2010 = vrot.lane.b32.xlu0 %v1985, 12
        %v2011 = vpop.permute.xlu0 %2010
        %2012 = vrot.lane.b32.xlu0 %v1997, 12
        %v2013 = vpop.permute.xlu0 %2012
        %v2015 = vsel %vm607, %v1678, %v1807
        %v2017 = vsel %vm607, %v1679, %v1809
        %v2019 = vsel %vm607, %v1680, %v1811
        %v2021 = vsel %vm607, %v1681, %v1813
        %v2023 = vsel %vm607, %v1682, %v1815
        %v2025 = vsel %vm607, %v1683, %v1817
        %v2027 = vsel %vm607, %v1684, %v1819
        %v2029 = vsel %vm607, %v1685, %v1821
        %v2031 = vsel %vm624, %v2015, %v1863
        %v2033 = vsel %vm624, %v2017, %v1865
        %v2035 = vsel %vm624, %v2019, %v1867
        %v2037 = vsel %vm624, %v2021, %v1869
        %v2039 = vsel %vm624, %v2023, %v1871
        %v2041 = vsel %vm624, %v2025, %v1873
        %v2043 = vsel %vm624, %v2027, %v1875
        %v2045 = vsel %vm624, %v2029, %v1877
        %v2047 = vsel %vm641, %v2031, %v1999
        %v2049 = vsel %vm641, %v2033, %v2001
        %v2051 = vsel %vm641, %v2035, %v2003
        %v2053 = vsel %vm641, %v2037, %v2005
        %v2055 = vsel %vm641, %v2039, %v2007
        %v2057 = vsel %vm641, %v2041, %v2009
        %v2059 = vsel %vm641, %v2043, %v2011
        %v2061 = vsel %vm641, %v2045, %v2013
        %s2062 = scalar_lea.vmem %s1, 16
        %v2063 = vld [vmem:[%s2062] sm:$0xf]
        %v2064 = vld [vmem:[%s2062 + $0x4] sm:$0xf]
        %v2067 = vunpack.c.l.b16 %v2063
        %v2068 = vunpack.c.l.b16 %v2064
        %v2069 = vpack.c.b16 %v2068, %v2067
        %v2071 = vsel %vm669, %v2047, 0
        %v2073 = vsel %vm669, %v2049, 0
        %v2075 = vsel %vm669, %v2051, 0
        %v2077 = vsel %vm669, %v2053, 0
        %v2079 = vsel %vm669, %v2055, 0
        %v2081 = vsel %vm669, %v2057, 0
        %v2083 = vsel %vm669, %v2059, 0
        %v2085 = vsel %vm669, %v2061, 0
        %2087 = vmatpush.bf16.msra.mxu0 0
        %2088 = vmatpush.bf16.msra.mxu0 0
        %2089 = vmatpush.bf16.msra.mxu0 0
        %2090 = vmatpush.bf16.msra.mxu0 0
        %2091 = vmatpush.bf16.msra.mxu0 0
        %2092 = vmatpush.bf16.msra.mxu0 0
        %2093 = vmatpush.bf16.msra.mxu0 0
        %2094 = vmatpush.bf16.msra.mxu0 %v2069
        %2095 = vmatmul.bf16.gmra.mxu0 %v2071
        %v2096 = vpop.f32.mrf.mxu0
        %v2097 = vadd.f32 %v661, %v2096
        %v2098 = vpop.f32.mrf.mxu0
        %v2099 = vadd.f32 %v661, %v2098
        %2100 = vmatmul.bf16.gmra.mxu0 %v2073
        %v2101 = vpop.f32.mrf.mxu0
        %v2102 = vadd.f32 %v661, %v2101
        %v2103 = vpop.f32.mrf.mxu0
        %v2104 = vadd.f32 %v661, %v2103
        %2105 = vmatmul.bf16.gmra.mxu0 %v2075
        %v2106 = vpop.f32.mrf.mxu0
        %v2107 = vadd.f32 %v661, %v2106
        %v2108 = vpop.f32.mrf.mxu0
        %v2109 = vadd.f32 %v661, %v2108
        %2110 = vmatmul.bf16.gmra.mxu0 %v2077
        %v2111 = vpop.f32.mrf.mxu0
        %v2112 = vadd.f32 %v661, %v2111
        %v2113 = vpop.f32.mrf.mxu0
        %v2114 = vadd.f32 %v661, %v2113
        %2115 = vmatmul.bf16.gmra.mxu0 %v2079
        %v2116 = vpop.f32.mrf.mxu0
        %v2117 = vadd.f32 %v661, %v2116
        %v2118 = vpop.f32.mrf.mxu0
        %v2119 = vadd.f32 %v661, %v2118
        %2120 = vmatmul.bf16.gmra.mxu0 %v2081
        %v2121 = vpop.f32.mrf.mxu0
        %v2122 = vadd.f32 %v661, %v2121
        %v2123 = vpop.f32.mrf.mxu0
        %v2124 = vadd.f32 %v661, %v2123
        %2125 = vmatmul.bf16.gmra.mxu0 %v2083
        %v2126 = vpop.f32.mrf.mxu0
        %v2127 = vadd.f32 %v661, %v2126
        %v2128 = vpop.f32.mrf.mxu0
        %v2129 = vadd.f32 %v661, %v2128
        %2130 = vmatmul.bf16.gmra.mxu0 %v2085
        %v2131 = vpop.f32.mrf.mxu0
        %v2132 = vadd.f32 %v661, %v2131
        %v2133 = vpop.f32.mrf.mxu0
        %v2134 = vadd.f32 %v661, %v2133
        %2135 = vdwg.mxu0
        %s2136 = scalar_lea.vmem %s173, 256 [#allocation2]
        %2137 = vst.msk [vmem:[%s2136] sm:$0xff] %vm607, %v2097
        %2138 = vst.msk [vmem:[%s2136 + $0x8] sm:$0xff] %vm607, %v2099
        %2139 = vst.msk [vmem:[%s2136 + $0x10] sm:$0xff] %vm607, %v2102
        %2140 = vst.msk [vmem:[%s2136 + $0x18] sm:$0xff] %vm607, %v2104
        %2141 = vst.msk [vmem:[%s2136 + $0x20] sm:$0xff] %vm607, %v2107
        %2142 = vst.msk [vmem:[%s2136 + $0x28] sm:$0xff] %vm607, %v2109
        %2143 = vst.msk [vmem:[%s2136 + $0x30] sm:$0xff] %vm607, %v2112
        %2144 = vst.msk [vmem:[%s2136 + $0x38] sm:$0xff] %vm607, %v2114
        %2145 = vst.msk [vmem:[%s2136 + $0x40] sm:$0xff] %vm607, %v2117
        %2146 = vst.msk [vmem:[%s2136 + $0x48] sm:$0xff] %vm607, %v2119
        %2147 = vst.msk [vmem:[%s2136 + $0x50] sm:$0xff] %vm607, %v2122
        %2148 = vst.msk [vmem:[%s2136 + $0x58] sm:$0xff] %vm607, %v2124
        %2149 = vst.msk [vmem:[%s2136 + $0x60] sm:$0xff] %vm607, %v2127
        %2150 = vst.msk [vmem:[%s2136 + $0x68] sm:$0xff] %vm607, %v2129
        %2151 = vst.msk [vmem:[%s2136 + $0x70] sm:$0xff] %vm607, %v2132
        %2152 = vst.msk [vmem:[%s2136 + $0x78] sm:$0xff] %vm607, %v2134
        %v2153 = vld [vmem:[%s213] sm:$0xf]
        %v2154 = vld [vmem:[%s213 + $0x4] sm:$0xf]
        %v2155 = vld [vmem:[%s213 + $0x8] sm:$0x1]
        %v2156 = vld [vmem:[%s213 + $0xc] sm:$0xf]
        %v2157 = vld [vmem:[%s213 + $0x10] sm:$0xf]
        %v2158 = vld [vmem:[%s213 + $0x14] sm:$0x1]
        %v2159 = vld [vmem:[%s213 + $0x18] sm:$0xf]
        %v2160 = vld [vmem:[%s213 + $0x1c] sm:$0xf]
        %v2161 = vld [vmem:[%s213 + $0x20] sm:$0x1]
        %v2162 = vld [vmem:[%s213 + $0x24] sm:$0xf]
        %v2163 = vld [vmem:[%s213 + $0x28] sm:$0xf]
        %v2164 = vld [vmem:[%s213 + $0x2c] sm:$0x1]
        %v2165 = vld [vmem:[%s213 + $0x30] sm:$0xf]
        %v2166 = vld [vmem:[%s213 + $0x34] sm:$0xf]
        %v2167 = vld [vmem:[%s213 + $0x38] sm:$0x1]
        %v2168 = vld [vmem:[%s213 + $0x3c] sm:$0xf]
        %v2169 = vld [vmem:[%s213 + $0x40] sm:$0xf]
        %v2170 = vld [vmem:[%s213 + $0x44] sm:$0x1]
        %v2171 = vld [vmem:[%s213 + $0x48] sm:$0xf]
        %v2172 = vld [vmem:[%s213 + $0x4c] sm:$0xf]
        %v2173 = vld [vmem:[%s213 + $0x50] sm:$0x1]
        %v2174 = vld [vmem:[%s213 + $0x54] sm:$0xf]
        %v2175 = vld [vmem:[%s213 + $0x58] sm:$0xf]
        %v2176 = vld [vmem:[%s213 + $0x5c] sm:$0x1]
        %v2177 = vld [vmem:[%s213] sm:$0xe]
        %v2178 = vld [vmem:[%s213 + $0xc] sm:$0xe]
        %v2179 = vld [vmem:[%s213 + $0x18] sm:$0xe]
        %v2180 = vld [vmem:[%s213 + $0x24] sm:$0xe]
        %v2181 = vld [vmem:[%s213 + $0x30] sm:$0xe]
        %v2182 = vld [vmem:[%s213 + $0x3c] sm:$0xe]
        %v2183 = vld [vmem:[%s213 + $0x48] sm:$0xe]
        %v2184 = vld [vmem:[%s213 + $0x54] sm:$0xe]
        %v2185 = vld [vmem:[%s1621] sm:$0xf]
        %v2186 = vld [vmem:[%s1621 + $0x4] sm:$0xf]
        %v2187 = vld [vmem:[%s1621 + $0x8] sm:$0x1]
        %v2188 = vld [vmem:[%s1621 + $0xc] sm:$0xf]
        %v2189 = vld [vmem:[%s1621 + $0x10] sm:$0xf]
        %v2190 = vld [vmem:[%s1621 + $0x14] sm:$0x1]
        %v2191 = vld [vmem:[%s1621 + $0x18] sm:$0xf]
        %v2192 = vld [vmem:[%s1621 + $0x1c] sm:$0xf]
        %v2193 = vld [vmem:[%s1621 + $0x20] sm:$0x1]
        %v2194 = vld [vmem:[%s1621 + $0x24] sm:$0xf]
        %v2195 = vld [vmem:[%s1621 + $0x28] sm:$0xf]
        %v2196 = vld [vmem:[%s1621 + $0x2c] sm:$0x1]
        %v2197 = vld [vmem:[%s1621 + $0x30] sm:$0xf]
        %v2198 = vld [vmem:[%s1621 + $0x34] sm:$0xf]
        %v2199 = vld [vmem:[%s1621 + $0x38] sm:$0x1]
        %v2200 = vld [vmem:[%s1621 + $0x3c] sm:$0xf]
        %v2201 = vld [vmem:[%s1621 + $0x40] sm:$0xf]
        %v2202 = vld [vmem:[%s1621 + $0x44] sm:$0x1]
        %v2203 = vld [vmem:[%s1621 + $0x48] sm:$0xf]
        %v2204 = vld [vmem:[%s1621 + $0x4c] sm:$0xf]
        %v2205 = vld [vmem:[%s1621 + $0x50] sm:$0x1]
        %v2206 = vld [vmem:[%s1621 + $0x54] sm:$0xf]
        %v2207 = vld [vmem:[%s1621 + $0x58] sm:$0xf]
        %v2208 = vld [vmem:[%s1621 + $0x5c] sm:$0x1]
        %v2209 = vld [vmem:[%s1621] sm:$0xe]
        %v2210 = vld [vmem:[%s1621 + $0xc] sm:$0xe]
        %v2211 = vld [vmem:[%s1621 + $0x18] sm:$0xe]
        %v2212 = vld [vmem:[%s1621 + $0x24] sm:$0xe]
        %v2213 = vld [vmem:[%s1621 + $0x30] sm:$0xe]
        %v2214 = vld [vmem:[%s1621 + $0x3c] sm:$0xe]
        %v2215 = vld [vmem:[%s1621 + $0x48] sm:$0xe]
        %v2216 = vld [vmem:[%s1621 + $0x54] sm:$0xe]
        %v2241 = vunpack.c.l.b16 %v2153
        %v2242 = vunpack.c.l.b16 %v2154
        %v2243 = vunpack.c.l.b16 %v2155
        %v2244 = vunpack.c.l.b16 %v2156
        %v2245 = vunpack.c.l.b16 %v2157
        %v2246 = vunpack.c.l.b16 %v2158
        %v2247 = vunpack.c.l.b16 %v2159
        %v2248 = vunpack.c.l.b16 %v2160
        %v2249 = vunpack.c.l.b16 %v2161
        %v2250 = vunpack.c.l.b16 %v2162
        %v2251 = vunpack.c.l.b16 %v2163
        %v2252 = vunpack.c.l.b16 %v2164
        %v2253 = vunpack.c.l.b16 %v2165
        %v2254 = vunpack.c.l.b16 %v2166
        %v2255 = vunpack.c.l.b16 %v2167
        %v2256 = vunpack.c.l.b16 %v2168
        %v2257 = vunpack.c.l.b16 %v2169
        %v2258 = vunpack.c.l.b16 %v2170
        %v2259 = vunpack.c.l.b16 %v2171
        %v2260 = vunpack.c.l.b16 %v2172
        %v2261 = vunpack.c.l.b16 %v2173
        %v2262 = vunpack.c.l.b16 %v2174
        %v2263 = vunpack.c.l.b16 %v2175
        %v2264 = vunpack.c.l.b16 %v2176
        %v2265 = vpack.c.b16 %v2242, %v2241
        %v2266 = vpack.c.b16 %v2243, %v2243
        %v2267 = vpack.c.b16 %v2245, %v2244
        %v2268 = vpack.c.b16 %v2246, %v2246
        %v2269 = vpack.c.b16 %v2248, %v2247
        %v2270 = vpack.c.b16 %v2249, %v2249
        %v2271 = vpack.c.b16 %v2251, %v2250
        %v2272 = vpack.c.b16 %v2252, %v2252
        %v2273 = vpack.c.b16 %v2254, %v2253
        %v2274 = vpack.c.b16 %v2255, %v2255
        %v2275 = vpack.c.b16 %v2257, %v2256
        %v2276 = vpack.c.b16 %v2258, %v2258
        %v2277 = vpack.c.b16 %v2260, %v2259
        %v2278 = vpack.c.b16 %v2261, %v2261
        %v2279 = vpack.c.b16 %v2263, %v2262
        %v2280 = vpack.c.b16 %v2264, %v2264
        %v2289 = vunpack.c.l.b16 %v2177
        %v2290 = vunpack.c.l.b16 %v2178
        %v2291 = vunpack.c.l.b16 %v2179
        %v2292 = vunpack.c.l.b16 %v2180
        %v2293 = vunpack.c.l.b16 %v2181
        %v2294 = vunpack.c.l.b16 %v2182
        %v2295 = vunpack.c.l.b16 %v2183
        %v2296 = vunpack.c.l.b16 %v2184
        %v2297 = vpack.c.b16 %v2242, %v2289
        %v2298 = vpack.c.b16 %v2245, %v2290
        %v2299 = vpack.c.b16 %v2248, %v2291
        %v2300 = vpack.c.b16 %v2251, %v2292
        %v2301 = vpack.c.b16 %v2254, %v2293
        %v2302 = vpack.c.b16 %v2257, %v2294
        %v2303 = vpack.c.b16 %v2260, %v2295
        %v2304 = vpack.c.b16 %v2263, %v2296
        %v2306 = vshrl.u32 %v2297, 16
        %v2308 = vshll.u32 %v2297, 16
        %v2310 = vrot.slane %v2308, 1
        %v2311 = vor.u32 %v2306, %v2310
        %v2313 = vshll.u32 %v2266, 16
        %v2315 = vrot.slane %v2313, 1
        %v2316 = vsel %vm302, %v2311, %v2315
        %v2317 = vshrl.u32 %v2266, 16
        %v2320 = vshrl.u32 %v2298, 16
        %v2322 = vshll.u32 %v2298, 16
        %v2324 = vrot.slane %v2322, 1
        %v2325 = vor.u32 %v2320, %v2324
        %v2327 = vshll.u32 %v2268, 16
        %v2329 = vrot.slane %v2327, 1
        %v2330 = vsel %vm302, %v2325, %v2329
        %v2331 = vshrl.u32 %v2268, 16
        %v2334 = vshrl.u32 %v2299, 16
        %v2336 = vshll.u32 %v2299, 16
        %v2338 = vrot.slane %v2336, 1
        %v2339 = vor.u32 %v2334, %v2338
        %v2341 = vshll.u32 %v2270, 16
        %v2343 = vrot.slane %v2341, 1
        %v2344 = vsel %vm302, %v2339, %v2343
        %v2345 = vshrl.u32 %v2270, 16
        %v2348 = vshrl.u32 %v2300, 16
        %v2350 = vshll.u32 %v2300, 16
        %v2352 = vrot.slane %v2350, 1
        %v2353 = vor.u32 %v2348, %v2352
        %v2355 = vshll.u32 %v2272, 16
        %v2357 = vrot.slane %v2355, 1
        %v2358 = vsel %vm302, %v2353, %v2357
        %v2359 = vshrl.u32 %v2272, 16
        %v2362 = vshrl.u32 %v2301, 16
        %v2364 = vshll.u32 %v2301, 16
        %v2366 = vrot.slane %v2364, 1
        %v2367 = vor.u32 %v2362, %v2366
        %v2369 = vshll.u32 %v2274, 16
        %v2371 = vrot.slane %v2369, 1
        %v2372 = vsel %vm302, %v2367, %v2371
        %v2373 = vshrl.u32 %v2274, 16
        %v2376 = vshrl.u32 %v2302, 16
        %v2378 = vshll.u32 %v2302, 16
        %v2380 = vrot.slane %v2378, 1
        %v2381 = vor.u32 %v2376, %v2380
        %v2383 = vshll.u32 %v2276, 16
        %v2385 = vrot.slane %v2383, 1
        %v2386 = vsel %vm302, %v2381, %v2385
        %v2387 = vshrl.u32 %v2276, 16
        %v2390 = vshrl.u32 %v2303, 16
        %v2392 = vshll.u32 %v2303, 16
        %v2394 = vrot.slane %v2392, 1
        %v2395 = vor.u32 %v2390, %v2394
        %v2397 = vshll.u32 %v2278, 16
        %v2399 = vrot.slane %v2397, 1
        %v2400 = vsel %vm302, %v2395, %v2399
        %v2401 = vshrl.u32 %v2278, 16
        %v2404 = vshrl.u32 %v2304, 16
        %v2406 = vshll.u32 %v2304, 16
        %v2408 = vrot.slane %v2406, 1
        %v2409 = vor.u32 %v2404, %v2408
        %v2411 = vshll.u32 %v2280, 16
        %v2413 = vrot.slane %v2411, 1
        %v2414 = vsel %vm302, %v2409, %v2413
        %v2415 = vshrl.u32 %v2280, 16
        %2417 = vrot.lane.b32.xlu0 %v2316, 4
        %v2418 = vpop.permute.xlu0 %2417
        %2419 = vrot.lane.b32.xlu0 %v2317, 4
        %v2420 = vpop.permute.xlu0 %2419
        %2421 = vrot.lane.b32.xlu0 %v2330, 4
        %v2422 = vpop.permute.xlu0 %2421
        %2423 = vrot.lane.b32.xlu0 %v2331, 4
        %v2424 = vpop.permute.xlu0 %2423
        %2425 = vrot.lane.b32.xlu0 %v2344, 4
        %v2426 = vpop.permute.xlu0 %2425
        %2427 = vrot.lane.b32.xlu0 %v2345, 4
        %v2428 = vpop.permute.xlu0 %2427
        %2429 = vrot.lane.b32.xlu0 %v2358, 4
        %v2430 = vpop.permute.xlu0 %2429
        %2431 = vrot.lane.b32.xlu0 %v2359, 4
        %v2432 = vpop.permute.xlu0 %2431
        %2433 = vrot.lane.b32.xlu0 %v2372, 4
        %v2434 = vpop.permute.xlu0 %2433
        %2435 = vrot.lane.b32.xlu0 %v2373, 4
        %v2436 = vpop.permute.xlu0 %2435
        %2437 = vrot.lane.b32.xlu0 %v2386, 4
        %v2438 = vpop.permute.xlu0 %2437
        %2439 = vrot.lane.b32.xlu0 %v2387, 4
        %v2440 = vpop.permute.xlu0 %2439
        %2441 = vrot.lane.b32.xlu0 %v2400, 4
        %v2442 = vpop.permute.xlu0 %2441
        %2443 = vrot.lane.b32.xlu0 %v2401, 4
        %v2444 = vpop.permute.xlu0 %2443
        %2445 = vrot.lane.b32.xlu0 %v2414, 4
        %v2446 = vpop.permute.xlu0 %2445
        %2447 = vrot.lane.b32.xlu0 %v2415, 4
        %v2448 = vpop.permute.xlu0 %2447
        %v2473 = vunpack.c.l.b16 %v2185
        %v2474 = vunpack.c.l.b16 %v2186
        %v2475 = vunpack.c.l.b16 %v2187
        %v2476 = vunpack.c.l.b16 %v2188
        %v2477 = vunpack.c.l.b16 %v2189
        %v2478 = vunpack.c.l.b16 %v2190
        %v2479 = vunpack.c.l.b16 %v2191
        %v2480 = vunpack.c.l.b16 %v2192
        %v2481 = vunpack.c.l.b16 %v2193
        %v2482 = vunpack.c.l.b16 %v2194
        %v2483 = vunpack.c.l.b16 %v2195
        %v2484 = vunpack.c.l.b16 %v2196
        %v2485 = vunpack.c.l.b16 %v2197
        %v2486 = vunpack.c.l.b16 %v2198
        %v2487 = vunpack.c.l.b16 %v2199
        %v2488 = vunpack.c.l.b16 %v2200
        %v2489 = vunpack.c.l.b16 %v2201
        %v2490 = vunpack.c.l.b16 %v2202
        %v2491 = vunpack.c.l.b16 %v2203
        %v2492 = vunpack.c.l.b16 %v2204
        %v2493 = vunpack.c.l.b16 %v2205
        %v2494 = vunpack.c.l.b16 %v2206
        %v2495 = vunpack.c.l.b16 %v2207
        %v2496 = vunpack.c.l.b16 %v2208
        %v2497 = vpack.c.b16 %v2474, %v2473
        %v2498 = vpack.c.b16 %v2475, %v2475
        %v2499 = vpack.c.b16 %v2477, %v2476
        %v2500 = vpack.c.b16 %v2478, %v2478
        %v2501 = vpack.c.b16 %v2480, %v2479
        %v2502 = vpack.c.b16 %v2481, %v2481
        %v2503 = vpack.c.b16 %v2483, %v2482
        %v2504 = vpack.c.b16 %v2484, %v2484
        %v2505 = vpack.c.b16 %v2486, %v2485
        %v2506 = vpack.c.b16 %v2487, %v2487
        %v2507 = vpack.c.b16 %v2489, %v2488
        %v2508 = vpack.c.b16 %v2490, %v2490
        %v2509 = vpack.c.b16 %v2492, %v2491
        %v2510 = vpack.c.b16 %v2493, %v2493
        %v2511 = vpack.c.b16 %v2495, %v2494
        %v2512 = vpack.c.b16 %v2496, %v2496
        %2513 = vrot.lane.b32.xlu0 %v2497, 8
        %v2514 = vpop.permute.xlu0 %2513
        %2515 = vrot.lane.b32.xlu0 %v2498, 8
        %v2516 = vpop.permute.xlu0 %2515
        %2517 = vrot.lane.b32.xlu0 %v2499, 8
        %v2518 = vpop.permute.xlu0 %2517
        %2519 = vrot.lane.b32.xlu0 %v2500, 8
        %v2520 = vpop.permute.xlu0 %2519
        %2521 = vrot.lane.b32.xlu0 %v2501, 8
        %v2522 = vpop.permute.xlu0 %2521
        %2523 = vrot.lane.b32.xlu0 %v2502, 8
        %v2524 = vpop.permute.xlu0 %2523
        %2525 = vrot.lane.b32.xlu0 %v2503, 8
        %v2526 = vpop.permute.xlu0 %2525
        %2527 = vrot.lane.b32.xlu0 %v2504, 8
        %v2528 = vpop.permute.xlu0 %2527
        %2529 = vrot.lane.b32.xlu0 %v2505, 8
        %v2530 = vpop.permute.xlu0 %2529
        %2531 = vrot.lane.b32.xlu0 %v2506, 8
        %v2532 = vpop.permute.xlu0 %2531
        %2533 = vrot.lane.b32.xlu0 %v2507, 8
        %v2534 = vpop.permute.xlu0 %2533
        %2535 = vrot.lane.b32.xlu0 %v2508, 8
        %v2536 = vpop.permute.xlu0 %2535
        %2537 = vrot.lane.b32.xlu0 %v2509, 8
        %v2538 = vpop.permute.xlu0 %2537
        %2539 = vrot.lane.b32.xlu0 %v2510, 8
        %v2540 = vpop.permute.xlu0 %2539
        %2541 = vrot.lane.b32.xlu0 %v2511, 8
        %v2542 = vpop.permute.xlu0 %2541
        %2543 = vrot.lane.b32.xlu0 %v2512, 8
        %v2544 = vpop.permute.xlu0 %2543
        %v2553 = vunpack.c.l.b16 %v2209
        %v2554 = vunpack.c.l.b16 %v2210
        %v2555 = vunpack.c.l.b16 %v2211
        %v2556 = vunpack.c.l.b16 %v2212
        %v2557 = vunpack.c.l.b16 %v2213
        %v2558 = vunpack.c.l.b16 %v2214
        %v2559 = vunpack.c.l.b16 %v2215
        %v2560 = vunpack.c.l.b16 %v2216
        %v2561 = vpack.c.b16 %v2474, %v2553
        %v2562 = vpack.c.b16 %v2477, %v2554
        %v2563 = vpack.c.b16 %v2480, %v2555
        %v2564 = vpack.c.b16 %v2483, %v2556
        %v2565 = vpack.c.b16 %v2486, %v2557
        %v2566 = vpack.c.b16 %v2489, %v2558
        %v2567 = vpack.c.b16 %v2492, %v2559
        %v2568 = vpack.c.b16 %v2495, %v2560
        %v2570 = vshrl.u32 %v2561, 16
        %v2572 = vshll.u32 %v2561, 16
        %v2574 = vrot.slane %v2572, 1
        %v2575 = vor.u32 %v2570, %v2574
        %v2577 = vshll.u32 %v2498, 16
        %v2579 = vrot.slane %v2577, 1
        %v2580 = vsel %vm302, %v2575, %v2579
        %v2581 = vshrl.u32 %v2498, 16
        %v2584 = vshrl.u32 %v2562, 16
        %v2586 = vshll.u32 %v2562, 16
        %v2588 = vrot.slane %v2586, 1
        %v2589 = vor.u32 %v2584, %v2588
        %v2591 = vshll.u32 %v2500, 16
        %v2593 = vrot.slane %v2591, 1
        %v2594 = vsel %vm302, %v2589, %v2593
        %v2595 = vshrl.u32 %v2500, 16
        %v2598 = vshrl.u32 %v2563, 16
        %v2600 = vshll.u32 %v2563, 16
        %v2602 = vrot.slane %v2600, 1
        %v2603 = vor.u32 %v2598, %v2602
        %v2605 = vshll.u32 %v2502, 16
        %v2607 = vrot.slane %v2605, 1
        %v2608 = vsel %vm302, %v2603, %v2607
        %v2609 = vshrl.u32 %v2502, 16
        %v2612 = vshrl.u32 %v2564, 16
        %v2614 = vshll.u32 %v2564, 16
        %v2616 = vrot.slane %v2614, 1
        %v2617 = vor.u32 %v2612, %v2616
        %v2619 = vshll.u32 %v2504, 16
        %v2621 = vrot.slane %v2619, 1
        %v2622 = vsel %vm302, %v2617, %v2621
        %v2623 = vshrl.u32 %v2504, 16
        %v2626 = vshrl.u32 %v2565, 16
        %v2628 = vshll.u32 %v2565, 16
        %v2630 = vrot.slane %v2628, 1
        %v2631 = vor.u32 %v2626, %v2630
        %v2633 = vshll.u32 %v2506, 16
        %v2635 = vrot.slane %v2633, 1
        %v2636 = vsel %vm302, %v2631, %v2635
        %v2637 = vshrl.u32 %v2506, 16
        %v2640 = vshrl.u32 %v2566, 16
        %v2642 = vshll.u32 %v2566, 16
        %v2644 = vrot.slane %v2642, 1
        %v2645 = vor.u32 %v2640, %v2644
        %v2647 = vshll.u32 %v2508, 16
        %v2649 = vrot.slane %v2647, 1
        %v2650 = vsel %vm302, %v2645, %v2649
        %v2651 = vshrl.u32 %v2508, 16
        %v2654 = vshrl.u32 %v2567, 16
        %v2656 = vshll.u32 %v2567, 16
        %v2658 = vrot.slane %v2656, 1
        %v2659 = vor.u32 %v2654, %v2658
        %v2661 = vshll.u32 %v2510, 16
        %v2663 = vrot.slane %v2661, 1
        %v2664 = vsel %vm302, %v2659, %v2663
        %v2665 = vshrl.u32 %v2510, 16
        %v2668 = vshrl.u32 %v2568, 16
        %v2670 = vshll.u32 %v2568, 16
        %v2672 = vrot.slane %v2670, 1
        %v2673 = vor.u32 %v2668, %v2672
        %v2675 = vshll.u32 %v2512, 16
        %v2677 = vrot.slane %v2675, 1
        %v2678 = vsel %vm302, %v2673, %v2677
        %v2679 = vshrl.u32 %v2512, 16
        %2681 = vrot.lane.b32.xlu0 %v2580, 12
        %v2682 = vpop.permute.xlu0 %2681
        %2683 = vrot.lane.b32.xlu0 %v2581, 12
        %v2684 = vpop.permute.xlu0 %2683
        %2685 = vrot.lane.b32.xlu0 %v2594, 12
        %v2686 = vpop.permute.xlu0 %2685
        %2687 = vrot.lane.b32.xlu0 %v2595, 12
        %v2688 = vpop.permute.xlu0 %2687
        %2689 = vrot.lane.b32.xlu0 %v2608, 12
        %v2690 = vpop.permute.xlu0 %2689
        %2691 = vrot.lane.b32.xlu0 %v2609, 12
        %v2692 = vpop.permute.xlu0 %2691
        %2693 = vrot.lane.b32.xlu0 %v2622, 12
        %v2694 = vpop.permute.xlu0 %2693
        %2695 = vrot.lane.b32.xlu0 %v2623, 12
        %v2696 = vpop.permute.xlu0 %2695
        %2697 = vrot.lane.b32.xlu0 %v2636, 12
        %v2698 = vpop.permute.xlu0 %2697
        %2699 = vrot.lane.b32.xlu0 %v2637, 12
        %v2700 = vpop.permute.xlu0 %2699
        %2701 = vrot.lane.b32.xlu0 %v2650, 12
        %v2702 = vpop.permute.xlu0 %2701
        %2703 = vrot.lane.b32.xlu0 %v2651, 12
        %v2704 = vpop.permute.xlu0 %2703
        %2705 = vrot.lane.b32.xlu0 %v2664, 12
        %v2706 = vpop.permute.xlu0 %2705
        %2707 = vrot.lane.b32.xlu0 %v2665, 12
        %v2708 = vpop.permute.xlu0 %2707
        %2709 = vrot.lane.b32.xlu0 %v2678, 12
        %v2710 = vpop.permute.xlu0 %2709
        %2711 = vrot.lane.b32.xlu0 %v2679, 12
        %v2712 = vpop.permute.xlu0 %2711
        %v2715 = vsel %vm607, %v2265, %v2418
        %v2717 = vsel %vm607, %v2266, %v2420
        %v2720 = vsel %vm607, %v2267, %v2422
        %v2722 = vsel %vm607, %v2268, %v2424
        %v2725 = vsel %vm607, %v2269, %v2426
        %v2727 = vsel %vm607, %v2270, %v2428
        %v2730 = vsel %vm607, %v2271, %v2430
        %v2732 = vsel %vm607, %v2272, %v2432
        %v2735 = vsel %vm607, %v2273, %v2434
        %v2737 = vsel %vm607, %v2274, %v2436
        %v2740 = vsel %vm607, %v2275, %v2438
        %v2742 = vsel %vm607, %v2276, %v2440
        %v2745 = vsel %vm607, %v2277, %v2442
        %v2747 = vsel %vm607, %v2278, %v2444
        %v2750 = vsel %vm607, %v2279, %v2446
        %v2752 = vsel %vm607, %v2280, %v2448
        %v2754 = vsel %vm624, %v2715, %v2514
        %v2756 = vsel %vm624, %v2717, %v2516
        %v2758 = vsel %vm624, %v2720, %v2518
        %v2760 = vsel %vm624, %v2722, %v2520
        %v2762 = vsel %vm624, %v2725, %v2522
        %v2764 = vsel %vm624, %v2727, %v2524
        %v2766 = vsel %vm624, %v2730, %v2526
        %v2768 = vsel %vm624, %v2732, %v2528
        %v2770 = vsel %vm624, %v2735, %v2530
        %v2772 = vsel %vm624, %v2737, %v2532
        %v2774 = vsel %vm624, %v2740, %v2534
        %v2776 = vsel %vm624, %v2742, %v2536
        %v2778 = vsel %vm624, %v2745, %v2538
        %v2780 = vsel %vm624, %v2747, %v2540
        %v2782 = vsel %vm624, %v2750, %v2542
        %v2784 = vsel %vm624, %v2752, %v2544
        %v2786 = vsel %vm641, %v2754, %v2682
        %v2788 = vsel %vm641, %v2756, %v2684
        %v2790 = vsel %vm641, %v2758, %v2686
        %v2792 = vsel %vm641, %v2760, %v2688
        %v2794 = vsel %vm641, %v2762, %v2690
        %v2796 = vsel %vm641, %v2764, %v2692
        %v2798 = vsel %vm641, %v2766, %v2694
        %v2800 = vsel %vm641, %v2768, %v2696
        %v2802 = vsel %vm641, %v2770, %v2698
        %v2804 = vsel %vm641, %v2772, %v2700
        %v2806 = vsel %vm641, %v2774, %v2702
        %v2808 = vsel %vm641, %v2776, %v2704
        %v2810 = vsel %vm641, %v2778, %v2706
        %v2812 = vsel %vm641, %v2780, %v2708
        %v2814 = vsel %vm641, %v2782, %v2710
        %v2816 = vsel %vm641, %v2784, %v2712
        %v2817 = vshrl.u32 %v2786, 16
        %v2819 = vshll.u32 %v2786, 16
        %v2821 = vrot.slane %v2819, 1
        %v2822 = vor.u32 %v2817, %v2821
        %v2823 = vshll.u32 %v2788, 16
        %v2825 = vrot.slane %v2823, 1
        %v2826 = vsel %vm302, %v2822, %v2825
        %v2827 = vshrl.u32 %v2790, 16
        %v2829 = vshll.u32 %v2790, 16
        %v2831 = vrot.slane %v2829, 1
        %v2832 = vor.u32 %v2827, %v2831
        %v2833 = vshll.u32 %v2792, 16
        %v2835 = vrot.slane %v2833, 1
        %v2836 = vsel %vm302, %v2832, %v2835
        %v2837 = vshrl.u32 %v2794, 16
        %v2839 = vshll.u32 %v2794, 16
        %v2841 = vrot.slane %v2839, 1
        %v2842 = vor.u32 %v2837, %v2841
        %v2843 = vshll.u32 %v2796, 16
        %v2845 = vrot.slane %v2843, 1
        %v2846 = vsel %vm302, %v2842, %v2845
        %v2847 = vshrl.u32 %v2798, 16
        %v2849 = vshll.u32 %v2798, 16
        %v2851 = vrot.slane %v2849, 1
        %v2852 = vor.u32 %v2847, %v2851
        %v2853 = vshll.u32 %v2800, 16
        %v2855 = vrot.slane %v2853, 1
        %v2856 = vsel %vm302, %v2852, %v2855
        %v2857 = vshrl.u32 %v2802, 16
        %v2859 = vshll.u32 %v2802, 16
        %v2861 = vrot.slane %v2859, 1
        %v2862 = vor.u32 %v2857, %v2861
        %v2863 = vshll.u32 %v2804, 16
        %v2865 = vrot.slane %v2863, 1
        %v2866 = vsel %vm302, %v2862, %v2865
        %v2867 = vshrl.u32 %v2806, 16
        %v2869 = vshll.u32 %v2806, 16
        %v2871 = vrot.slane %v2869, 1
        %v2872 = vor.u32 %v2867, %v2871
        %v2873 = vshll.u32 %v2808, 16
        %v2875 = vrot.slane %v2873, 1
        %v2876 = vsel %vm302, %v2872, %v2875
        %v2877 = vshrl.u32 %v2810, 16
        %v2879 = vshll.u32 %v2810, 16
        %v2881 = vrot.slane %v2879, 1
        %v2882 = vor.u32 %v2877, %v2881
        %v2883 = vshll.u32 %v2812, 16
        %v2885 = vrot.slane %v2883, 1
        %v2886 = vsel %vm302, %v2882, %v2885
        %v2887 = vshrl.u32 %v2814, 16
        %v2889 = vshll.u32 %v2814, 16
        %v2891 = vrot.slane %v2889, 1
        %v2892 = vor.u32 %v2887, %v2891
        %v2893 = vshll.u32 %v2816, 16
        %v2895 = vrot.slane %v2893, 1
        %v2896 = vsel %vm302, %v2892, %v2895
        %s2897 = scalar_lea.vmem %s1, 24
        %v2898 = vld [vmem:[%s2897] sm:$0xf]
        %v2899 = vld [vmem:[%s2897 + $0x4] sm:$0xf]
        %v2902 = vunpack.c.l.b16 %v2898
        %v2903 = vunpack.c.l.b16 %v2899
        %v2904 = vpack.c.b16 %v2903, %v2902
        %v2907 = vsel %vm669, %v2826, 0
        %v2910 = vsel %vm669, %v2836, 0
        %v2913 = vsel %vm669, %v2846, 0
        %v2916 = vsel %vm669, %v2856, 0
        %v2919 = vsel %vm669, %v2866, 0
        %v2922 = vsel %vm669, %v2876, 0
        %v2925 = vsel %vm669, %v2886, 0
        %v2928 = vsel %vm669, %v2896, 0
        %2930 = vmatpush.bf16.msra.mxu0 0
        %2931 = vmatpush.bf16.msra.mxu0 0
        %2932 = vmatpush.bf16.msra.mxu0 0
        %2933 = vmatpush.bf16.msra.mxu0 0
        %2934 = vmatpush.bf16.msra.mxu0 0
        %2935 = vmatpush.bf16.msra.mxu0 0
        %2936 = vmatpush.bf16.msra.mxu0 0
        %2937 = vmatpush.bf16.msra.mxu0 %v2904
        %2938 = vmatmul.bf16.gmra.mxu0 %v2907
        %v2939 = vpop.f32.mrf.mxu0
        %v2940 = vadd.f32 %v661, %v2939
        %v2941 = vpop.f32.mrf.mxu0
        %v2942 = vadd.f32 %v661, %v2941
        %2943 = vmatmul.bf16.gmra.mxu0 %v2910
        %v2944 = vpop.f32.mrf.mxu0
        %v2945 = vadd.f32 %v661, %v2944
        %v2946 = vpop.f32.mrf.mxu0
        %v2947 = vadd.f32 %v661, %v2946
        %2948 = vmatmul.bf16.gmra.mxu0 %v2913
        %v2949 = vpop.f32.mrf.mxu0
        %v2950 = vadd.f32 %v661, %v2949
        %v2951 = vpop.f32.mrf.mxu0
        %v2952 = vadd.f32 %v661, %v2951
        %2953 = vmatmul.bf16.gmra.mxu0 %v2916
        %v2954 = vpop.f32.mrf.mxu0
        %v2955 = vadd.f32 %v661, %v2954
        %v2956 = vpop.f32.mrf.mxu0
        %v2957 = vadd.f32 %v661, %v2956
        %2958 = vmatmul.bf16.gmra.mxu0 %v2919
        %v2959 = vpop.f32.mrf.mxu0
        %v2960 = vadd.f32 %v661, %v2959
        %v2961 = vpop.f32.mrf.mxu0
        %v2962 = vadd.f32 %v661, %v2961
        %2963 = vmatmul.bf16.gmra.mxu0 %v2922
        %v2964 = vpop.f32.mrf.mxu0
        %v2965 = vadd.f32 %v661, %v2964
        %v2966 = vpop.f32.mrf.mxu0
        %v2967 = vadd.f32 %v661, %v2966
        %2968 = vmatmul.bf16.gmra.mxu0 %v2925
        %v2969 = vpop.f32.mrf.mxu0
        %v2970 = vadd.f32 %v661, %v2969
        %v2971 = vpop.f32.mrf.mxu0
        %v2972 = vadd.f32 %v661, %v2971
        %2973 = vmatmul.bf16.gmra.mxu0 %v2928
        %v2974 = vpop.f32.mrf.mxu0
        %v2975 = vadd.f32 %v661, %v2974
        %v2976 = vpop.f32.mrf.mxu0
        %v2977 = vadd.f32 %v661, %v2976
        %2978 = vdwg.mxu0
        %s2979 = scalar_lea.vmem %s173, 384 [#allocation2]
        %2980 = vst.msk [vmem:[%s2979] sm:$0xff] %vm607, %v2940
        %2981 = vst.msk [vmem:[%s2979 + $0x8] sm:$0xff] %vm607, %v2942
        %2982 = vst.msk [vmem:[%s2979 + $0x10] sm:$0xff] %vm607, %v2945
        %2983 = vst.msk [vmem:[%s2979 + $0x18] sm:$0xff] %vm607, %v2947
        %2984 = vst.msk [vmem:[%s2979 + $0x20] sm:$0xff] %vm607, %v2950
        %2985 = vst.msk [vmem:[%s2979 + $0x28] sm:$0xff] %vm607, %v2952
        %2986 = vst.msk [vmem:[%s2979 + $0x30] sm:$0xff] %vm607, %v2955
        %2987 = vst.msk [vmem:[%s2979 + $0x38] sm:$0xff] %vm607, %v2957
        %2988 = vst.msk [vmem:[%s2979 + $0x40] sm:$0xff] %vm607, %v2960
        %2989 = vst.msk [vmem:[%s2979 + $0x48] sm:$0xff] %vm607, %v2962
        %2990 = vst.msk [vmem:[%s2979 + $0x50] sm:$0xff] %vm607, %v2965
        %2991 = vst.msk [vmem:[%s2979 + $0x58] sm:$0xff] %vm607, %v2967
        %2992 = vst.msk [vmem:[%s2979 + $0x60] sm:$0xff] %vm607, %v2970
        %2993 = vst.msk [vmem:[%s2979 + $0x68] sm:$0xff] %vm607, %v2972
        %2994 = vst.msk [vmem:[%s2979 + $0x70] sm:$0xff] %vm607, %v2975
        %2995 = vst.msk [vmem:[%s2979 + $0x78] sm:$0xff] %vm607, %v2977
        %s2996 = sand.u32 %s104, 1
        %s2997 = sand.u32 %s104, 1
        %s2998 = smul.addr %s2997, 512
        %s2999 = scalar_lea.vmem [#allocation2], %s2998
        // Predicated region
        $region33: #{tpu_custom_call.1} parent=31 // pred_check
          %p3000 = pneg %p114
        $region34: #{tpu_custom_call.1} parent=31 // pred_check_branch
          %3002 = sbr.rel (%p3000) target = $region36
        $region35: #{tpu_custom_call.1} parent=31 // pred_region
          %s3003 = smul.u32 8, %s19
          %s3004 = smul.addr %s3003, 2
          %s3005 = smul.addr %s18, 128
          %s3006 = sadd.s32 %s3004, %s3005
          %s3007 = smul.addr %s3006, 8
          %s3008 = scalar_lea.vmem %s3, %s3007
          // Predicated region
          $region37: #{tpu_custom_call.1} parent=35 // pred_check
            _
          $region38: #{tpu_custom_call.1} parent=35 // pred_check_branch
            %3010 = sbr.rel (0) target = $region40
          $region39: #{tpu_custom_call.1} parent=35 // pred_region
            // Predicated region
            $region41: #{tpu_custom_call.1} parent=39 // pred_check
              _
            $region42: #{tpu_custom_call.1} parent=39 // pred_check_branch
              %3012 = sbr.rel (0) target = $region44
            $region43: #{tpu_custom_call.1} parent=39 // pred_region
              // Predicated region
              $region56: #{tpu_custom_call.1} parent=43 // pred_check
                _
              $region57: #{tpu_custom_call.1} parent=43 // pred_check_branch
                %3154 = sbr.rel (0) target = $region59
              $region58: #{tpu_custom_call.1} parent=43 // pred_region
                loop: start=0, step=1, limit=1
                $region60: #{tpu_custom_call.1} parent=58 // loop_pre_header
                  _
                $region61: #{tpu_custom_call.1} parent=58 // loop_header
                  %s3156 = sphi 0, %s3160
                  %p3157 = scmp.ge.s32.totalorder %s3156, 1
                  %s3161 = sphi %s2999, %s2999
                  %s3162 = sphi %s3008, %s3008
                $region62: #{tpu_custom_call.1} parent=58 // loop_header_branch
                  %3159 = sbr.rel (%p3157) target = $region66
                $region63: #{tpu_custom_call.1} parent=58 // loop_body
                  %v3163 = vld [vmem:[%s3161] sm:$0xff]
                  %3164 = vst [vmem:[%s3162] sm:$0xff] %v3163
                  %v3165 = vld [vmem:[%s3161 + $0x8] sm:$0xff]
                  %3166 = vst [vmem:[%s3162 + $0x8] sm:$0xff] %v3165
                  %v3167 = vld [vmem:[%s3161 + $0x10] sm:$0xff]
                  %3168 = vst [vmem:[%s3162 + $0x10] sm:$0xff] %v3167
                  %v3169 = vld [vmem:[%s3161 + $0x18] sm:$0xff]
                  %3170 = vst [vmem:[%s3162 + $0x18] sm:$0xff] %v3169
                  %v3171 = vld [vmem:[%s3161 + $0x20] sm:$0xff]
                  %3172 = vst [vmem:[%s3162 + $0x20] sm:$0xff] %v3171
                  %v3173 = vld [vmem:[%s3161 + $0x28] sm:$0xff]
                  %3174 = vst [vmem:[%s3162 + $0x28] sm:$0xff] %v3173
                  %v3175 = vld [vmem:[%s3161 + $0x30] sm:$0xff]
                  %3176 = vst [vmem:[%s3162 + $0x30] sm:$0xff] %v3175
                  %v3177 = vld [vmem:[%s3161 + $0x38] sm:$0xff]
                  %3178 = vst [vmem:[%s3162 + $0x38] sm:$0xff] %v3177
                  %v3179 = vld [vmem:[%s3161 + $0x40] sm:$0xff]
                  %3180 = vst [vmem:[%s3162 + $0x40] sm:$0xff] %v3179
                  %v3181 = vld [vmem:[%s3161 + $0x48] sm:$0xff]
                  %3182 = vst [vmem:[%s3162 + $0x48] sm:$0xff] %v3181
                  %v3183 = vld [vmem:[%s3161 + $0x50] sm:$0xff]
                  %3184 = vst [vmem:[%s3162 + $0x50] sm:$0xff] %v3183
                  %v3185 = vld [vmem:[%s3161 + $0x58] sm:$0xff]
                  %3186 = vst [vmem:[%s3162 + $0x58] sm:$0xff] %v3185
                  %v3187 = vld [vmem:[%s3161 + $0x60] sm:$0xff]
                  %3188 = vst [vmem:[%s3162 + $0x60] sm:$0xff] %v3187
                  %v3189 = vld [vmem:[%s3161 + $0x68] sm:$0xff]
                  %3190 = vst [vmem:[%s3162 + $0x68] sm:$0xff] %v3189
                  %v3191 = vld [vmem:[%s3161 + $0x70] sm:$0xff]
                  %3192 = vst [vmem:[%s3162 + $0x70] sm:$0xff] %v3191
                  %v3193 = vld [vmem:[%s3161 + $0x78] sm:$0xff]
                  %3194 = vst [vmem:[%s3162 + $0x78] sm:$0xff] %v3193
                  %v3195 = vld [vmem:[%s3161 + $0x80] sm:$0xff]
                  %3196 = vst [vmem:[%s3162 + $0x100] sm:$0xff] %v3195
                  %v3197 = vld [vmem:[%s3161 + $0x88] sm:$0xff]
                  %3198 = vst [vmem:[%s3162 + $0x108] sm:$0xff] %v3197
                  %v3199 = vld [vmem:[%s3161 + $0x90] sm:$0xff]
                  %3200 = vst [vmem:[%s3162 + $0x110] sm:$0xff] %v3199
                  %v3201 = vld [vmem:[%s3161 + $0x98] sm:$0xff]
                  %3202 = vst [vmem:[%s3162 + $0x118] sm:$0xff] %v3201
                  %v3203 = vld [vmem:[%s3161 + $0xa0] sm:$0xff]
                  %3204 = vst [vmem:[%s3162 + $0x120] sm:$0xff] %v3203
                  %v3205 = vld [vmem:[%s3161 + $0xa8] sm:$0xff]
                  %3206 = vst [vmem:[%s3162 + $0x128] sm:$0xff] %v3205
                  %v3207 = vld [vmem:[%s3161 + $0xb0] sm:$0xff]
                  %3208 = vst [vmem:[%s3162 + $0x130] sm:$0xff] %v3207
                  %v3209 = vld [vmem:[%s3161 + $0xb8] sm:$0xff]
                  %3210 = vst [vmem:[%s3162 + $0x138] sm:$0xff] %v3209
                  %v3211 = vld [vmem:[%s3161 + $0xc0] sm:$0xff]
                  %3212 = vst [vmem:[%s3162 + $0x140] sm:$0xff] %v3211
                  %v3213 = vld [vmem:[%s3161 + $0xc8] sm:$0xff]
                  %3214 = vst [vmem:[%s3162 + $0x148] sm:$0xff] %v3213
                  %v3215 = vld [vmem:[%s3161 + $0xd0] sm:$0xff]
                  %3216 = vst [vmem:[%s3162 + $0x150] sm:$0xff] %v3215
                  %v3217 = vld [vmem:[%s3161 + $0xd8] sm:$0xff]
                  %3218 = vst [vmem:[%s3162 + $0x158] sm:$0xff] %v3217
                  %v3219 = vld [vmem:[%s3161 + $0xe0] sm:$0xff]
                  %3220 = vst [vmem:[%s3162 + $0x160] sm:$0xff] %v3219
                  %v3221 = vld [vmem:[%s3161 + $0xe8] sm:$0xff]
                  %3222 = vst [vmem:[%s3162 + $0x168] sm:$0xff] %v3221
                  %v3223 = vld [vmem:[%s3161 + $0xf0] sm:$0xff]
                  %3224 = vst [vmem:[%s3162 + $0x170] sm:$0xff] %v3223
                  %v3225 = vld [vmem:[%s3161 + $0xf8] sm:$0xff]
                  %3226 = vst [vmem:[%s3162 + $0x178] sm:$0xff] %v3225
                  %v3227 = vld [vmem:[%s3161 + $0x100] sm:$0xff]
                  %3228 = vst [vmem:[%s3162 + $0x200] sm:$0xff] %v3227
                  %v3229 = vld [vmem:[%s3161 + $0x108] sm:$0xff]
                  %3230 = vst [vmem:[%s3162 + $0x208] sm:$0xff] %v3229
                  %v3231 = vld [vmem:[%s3161 + $0x110] sm:$0xff]
                  %3232 = vst [vmem:[%s3162 + $0x210] sm:$0xff] %v3231
                  %v3233 = vld [vmem:[%s3161 + $0x118] sm:$0xff]
                  %3234 = vst [vmem:[%s3162 + $0x218] sm:$0xff] %v3233
                  %v3235 = vld [vmem:[%s3161 + $0x120] sm:$0xff]
                  %3236 = vst [vmem:[%s3162 + $0x220] sm:$0xff] %v3235
                  %v3237 = vld [vmem:[%s3161 + $0x128] sm:$0xff]
                  %3238 = vst [vmem:[%s3162 + $0x228] sm:$0xff] %v3237
                  %v3239 = vld [vmem:[%s3161 + $0x130] sm:$0xff]
                  %3240 = vst [vmem:[%s3162 + $0x230] sm:$0xff] %v3239
                  %v3241 = vld [vmem:[%s3161 + $0x138] sm:$0xff]
                  %3242 = vst [vmem:[%s3162 + $0x238] sm:$0xff] %v3241
                  %v3243 = vld [vmem:[%s3161 + $0x140] sm:$0xff]
                  %3244 = vst [vmem:[%s3162 + $0x240] sm:$0xff] %v3243
                  %v3245 = vld [vmem:[%s3161 + $0x148] sm:$0xff]
                  %3246 = vst [vmem:[%s3162 + $0x248] sm:$0xff] %v3245
                  %v3247 = vld [vmem:[%s3161 + $0x150] sm:$0xff]
                  %3248 = vst [vmem:[%s3162 + $0x250] sm:$0xff] %v3247
                  %v3249 = vld [vmem:[%s3161 + $0x158] sm:$0xff]
                  %3250 = vst [vmem:[%s3162 + $0x258] sm:$0xff] %v3249
                  %v3251 = vld [vmem:[%s3161 + $0x160] sm:$0xff]
                  %3252 = vst [vmem:[%s3162 + $0x260] sm:$0xff] %v3251
                  %v3253 = vld [vmem:[%s3161 + $0x168] sm:$0xff]
                  %3254 = vst [vmem:[%s3162 + $0x268] sm:$0xff] %v3253
                  %v3255 = vld [vmem:[%s3161 + $0x170] sm:$0xff]
                  %3256 = vst [vmem:[%s3162 + $0x270] sm:$0xff] %v3255
                  %v3257 = vld [vmem:[%s3161 + $0x178] sm:$0xff]
                  %3258 = vst [vmem:[%s3162 + $0x278] sm:$0xff] %v3257
                  %v3259 = vld [vmem:[%s3161 + $0x180] sm:$0xff]
                  %3260 = vst [vmem:[%s3162 + $0x300] sm:$0xff] %v3259
                  %v3261 = vld [vmem:[%s3161 + $0x188] sm:$0xff]
                  %3262 = vst [vmem:[%s3162 + $0x308] sm:$0xff] %v3261
                  %v3263 = vld [vmem:[%s3161 + $0x190] sm:$0xff]
                  %3264 = vst [vmem:[%s3162 + $0x310] sm:$0xff] %v3263
                  %v3265 = vld [vmem:[%s3161 + $0x198] sm:$0xff]
                  %3266 = vst [vmem:[%s3162 + $0x318] sm:$0xff] %v3265
                  %v3267 = vld [vmem:[%s3161 + $0x1a0] sm:$0xff]
                  %3268 = vst [vmem:[%s3162 + $0x320] sm:$0xff] %v3267
                  %v3269 = vld [vmem:[%s3161 + $0x1a8] sm:$0xff]
                  %3270 = vst [vmem:[%s3162 + $0x328] sm:$0xff] %v3269
                  %v3271 = vld [vmem:[%s3161 + $0x1b0] sm:$0xff]
                  %3272 = vst [vmem:[%s3162 + $0x330] sm:$0xff] %v3271
                  %v3273 = vld [vmem:[%s3161 + $0x1b8] sm:$0xff]
                  %3274 = vst [vmem:[%s3162 + $0x338] sm:$0xff] %v3273
                  %v3275 = vld [vmem:[%s3161 + $0x1c0] sm:$0xff]
                  %3276 = vst [vmem:[%s3162 + $0x340] sm:$0xff] %v3275
                  %v3277 = vld [vmem:[%s3161 + $0x1c8] sm:$0xff]
                  %3278 = vst [vmem:[%s3162 + $0x348] sm:$0xff] %v3277
                  %v3279 = vld [vmem:[%s3161 + $0x1d0] sm:$0xff]
                  %3280 = vst [vmem:[%s3162 + $0x350] sm:$0xff] %v3279
                  %v3281 = vld [vmem:[%s3161 + $0x1d8] sm:$0xff]
                  %3282 = vst [vmem:[%s3162 + $0x358] sm:$0xff] %v3281
                  %v3283 = vld [vmem:[%s3161 + $0x1e0] sm:$0xff]
                  %3284 = vst [vmem:[%s3162 + $0x360] sm:$0xff] %v3283
                  %v3285 = vld [vmem:[%s3161 + $0x1e8] sm:$0xff]
                  %3286 = vst [vmem:[%s3162 + $0x368] sm:$0xff] %v3285
                  %v3287 = vld [vmem:[%s3161 + $0x1f0] sm:$0xff]
                  %3288 = vst [vmem:[%s3162 + $0x370] sm:$0xff] %v3287
                  %v3289 = vld [vmem:[%s3161 + $0x1f8] sm:$0xff]
                  %3290 = vst [vmem:[%s3162 + $0x378] sm:$0xff] %v3289
                $region64: #{tpu_custom_call.1} parent=58 // loop_footer
                  %s3160 = sadd.s32 1, %s3156
                $region65: #{tpu_custom_call.1} parent=58 // loop_footer_branch
                  %3155 = sbr.rel target = $region61
                $region66: #{tpu_custom_call.1} parent=58 // loop_exit
                  _
              $region59: #{tpu_custom_call.1} parent=43 // pred_fallthru
                _
              // Predicated region
              $region67: #{tpu_custom_call.1} parent=43 // pred_check
                _
              $region68: #{tpu_custom_call.1} parent=43 // pred_check_branch
                %3292 = sbr.rel target = $region70
              $region69: #{tpu_custom_call.1} parent=43 // pred_region
                _
              $region70: #{tpu_custom_call.1} parent=43 // pred_fallthru
                _
            $region44: #{tpu_custom_call.1} parent=39 // pred_fallthru
              _
            // Predicated region
            $region45: #{tpu_custom_call.1} parent=39 // pred_check
              _
            $region46: #{tpu_custom_call.1} parent=39 // pred_check_branch
              %3014 = sbr.rel target = $region48
            $region47: #{tpu_custom_call.1} parent=39 // pred_region
              %s3016 = ssub.s32 256, 1
              loop: start=0, step=1, limit=1
              $region49: #{tpu_custom_call.1} parent=47 // loop_pre_header
                _
              $region50: #{tpu_custom_call.1} parent=47 // loop_header
                %s3018 = sphi 0, %s3022
                %p3019 = scmp.ge.s32.totalorder %s3018, 1
                %s3023 = sphi %s2999, %s2999
                %s3024 = sphi %s3008, %s3008
              $region51: #{tpu_custom_call.1} parent=47 // loop_header_branch
                %3021 = sbr.rel (%p3019) target = $region55
              $region52: #{tpu_custom_call.1} parent=47 // loop_body
                %v3025 = vld [vmem:[%s3023] sm:%s3016]
                %3026 = vst [vmem:[%s3024] sm:%s3016] %v3025
                %v3027 = vld [vmem:[%s3023 + $0x8] sm:%s3016]
                %3028 = vst [vmem:[%s3024 + $0x8] sm:%s3016] %v3027
                %v3029 = vld [vmem:[%s3023 + $0x10] sm:%s3016]
                %3030 = vst [vmem:[%s3024 + $0x10] sm:%s3016] %v3029
                %v3031 = vld [vmem:[%s3023 + $0x18] sm:%s3016]
                %3032 = vst [vmem:[%s3024 + $0x18] sm:%s3016] %v3031
                %v3033 = vld [vmem:[%s3023 + $0x20] sm:%s3016]
                %3034 = vst [vmem:[%s3024 + $0x20] sm:%s3016] %v3033
                %v3035 = vld [vmem:[%s3023 + $0x28] sm:%s3016]
                %3036 = vst [vmem:[%s3024 + $0x28] sm:%s3016] %v3035
                %v3037 = vld [vmem:[%s3023 + $0x30] sm:%s3016]
                %3038 = vst [vmem:[%s3024 + $0x30] sm:%s3016] %v3037
                %v3039 = vld [vmem:[%s3023 + $0x38] sm:%s3016]
                %3040 = vst [vmem:[%s3024 + $0x38] sm:%s3016] %v3039
                %v3041 = vld [vmem:[%s3023 + $0x40] sm:%s3016]
                %3042 = vst [vmem:[%s3024 + $0x40] sm:%s3016] %v3041
                %v3043 = vld [vmem:[%s3023 + $0x48] sm:%s3016]
                %3044 = vst [vmem:[%s3024 + $0x48] sm:%s3016] %v3043
                %v3045 = vld [vmem:[%s3023 + $0x50] sm:%s3016]
                %3046 = vst [vmem:[%s3024 + $0x50] sm:%s3016] %v3045
                %v3047 = vld [vmem:[%s3023 + $0x58] sm:%s3016]
                %3048 = vst [vmem:[%s3024 + $0x58] sm:%s3016] %v3047
                %v3049 = vld [vmem:[%s3023 + $0x60] sm:%s3016]
                %3050 = vst [vmem:[%s3024 + $0x60] sm:%s3016] %v3049
                %v3051 = vld [vmem:[%s3023 + $0x68] sm:%s3016]
                %3052 = vst [vmem:[%s3024 + $0x68] sm:%s3016] %v3051
                %v3053 = vld [vmem:[%s3023 + $0x70] sm:%s3016]
                %3054 = vst [vmem:[%s3024 + $0x70] sm:%s3016] %v3053
                %v3055 = vld [vmem:[%s3023 + $0x78] sm:%s3016]
                %3056 = vst [vmem:[%s3024 + $0x78] sm:%s3016] %v3055
                %v3057 = vld [vmem:[%s3023 + $0x80] sm:%s3016]
                %3058 = vst [vmem:[%s3024 + $0x100] sm:%s3016] %v3057
                %v3059 = vld [vmem:[%s3023 + $0x88] sm:%s3016]
                %3060 = vst [vmem:[%s3024 + $0x108] sm:%s3016] %v3059
                %v3061 = vld [vmem:[%s3023 + $0x90] sm:%s3016]
                %3062 = vst [vmem:[%s3024 + $0x110] sm:%s3016] %v3061
                %v3063 = vld [vmem:[%s3023 + $0x98] sm:%s3016]
                %3064 = vst [vmem:[%s3024 + $0x118] sm:%s3016] %v3063
                %v3065 = vld [vmem:[%s3023 + $0xa0] sm:%s3016]
                %3066 = vst [vmem:[%s3024 + $0x120] sm:%s3016] %v3065
                %v3067 = vld [vmem:[%s3023 + $0xa8] sm:%s3016]
                %3068 = vst [vmem:[%s3024 + $0x128] sm:%s3016] %v3067
                %v3069 = vld [vmem:[%s3023 + $0xb0] sm:%s3016]
                %3070 = vst [vmem:[%s3024 + $0x130] sm:%s3016] %v3069
                %v3071 = vld [vmem:[%s3023 + $0xb8] sm:%s3016]
                %3072 = vst [vmem:[%s3024 + $0x138] sm:%s3016] %v3071
                %v3073 = vld [vmem:[%s3023 + $0xc0] sm:%s3016]
                %3074 = vst [vmem:[%s3024 + $0x140] sm:%s3016] %v3073
                %v3075 = vld [vmem:[%s3023 + $0xc8] sm:%s3016]
                %3076 = vst [vmem:[%s3024 + $0x148] sm:%s3016] %v3075
                %v3077 = vld [vmem:[%s3023 + $0xd0] sm:%s3016]
                %3078 = vst [vmem:[%s3024 + $0x150] sm:%s3016] %v3077
                %v3079 = vld [vmem:[%s3023 + $0xd8] sm:%s3016]
                %3080 = vst [vmem:[%s3024 + $0x158] sm:%s3016] %v3079
                %v3081 = vld [vmem:[%s3023 + $0xe0] sm:%s3016]
                %3082 = vst [vmem:[%s3024 + $0x160] sm:%s3016] %v3081
                %v3083 = vld [vmem:[%s3023 + $0xe8] sm:%s3016]
                %3084 = vst [vmem:[%s3024 + $0x168] sm:%s3016] %v3083
                %v3085 = vld [vmem:[%s3023 + $0xf0] sm:%s3016]
                %3086 = vst [vmem:[%s3024 + $0x170] sm:%s3016] %v3085
                %v3087 = vld [vmem:[%s3023 + $0xf8] sm:%s3016]
                %3088 = vst [vmem:[%s3024 + $0x178] sm:%s3016] %v3087
                %v3089 = vld [vmem:[%s3023 + $0x100] sm:%s3016]
                %3090 = vst [vmem:[%s3024 + $0x200] sm:%s3016] %v3089
                %v3091 = vld [vmem:[%s3023 + $0x108] sm:%s3016]
                %3092 = vst [vmem:[%s3024 + $0x208] sm:%s3016] %v3091
                %v3093 = vld [vmem:[%s3023 + $0x110] sm:%s3016]
                %3094 = vst [vmem:[%s3024 + $0x210] sm:%s3016] %v3093
                %v3095 = vld [vmem:[%s3023 + $0x118] sm:%s3016]
                %3096 = vst [vmem:[%s3024 + $0x218] sm:%s3016] %v3095
                %v3097 = vld [vmem:[%s3023 + $0x120] sm:%s3016]
                %3098 = vst [vmem:[%s3024 + $0x220] sm:%s3016] %v3097
                %v3099 = vld [vmem:[%s3023 + $0x128] sm:%s3016]
                %3100 = vst [vmem:[%s3024 + $0x228] sm:%s3016] %v3099
                %v3101 = vld [vmem:[%s3023 + $0x130] sm:%s3016]
                %3102 = vst [vmem:[%s3024 + $0x230] sm:%s3016] %v3101
                %v3103 = vld [vmem:[%s3023 + $0x138] sm:%s3016]
                %3104 = vst [vmem:[%s3024 + $0x238] sm:%s3016] %v3103
                %v3105 = vld [vmem:[%s3023 + $0x140] sm:%s3016]
                %3106 = vst [vmem:[%s3024 + $0x240] sm:%s3016] %v3105
                %v3107 = vld [vmem:[%s3023 + $0x148] sm:%s3016]
                %3108 = vst [vmem:[%s3024 + $0x248] sm:%s3016] %v3107
                %v3109 = vld [vmem:[%s3023 + $0x150] sm:%s3016]
                %3110 = vst [vmem:[%s3024 + $0x250] sm:%s3016] %v3109
                %v3111 = vld [vmem:[%s3023 + $0x158] sm:%s3016]
                %3112 = vst [vmem:[%s3024 + $0x258] sm:%s3016] %v3111
                %v3113 = vld [vmem:[%s3023 + $0x160] sm:%s3016]
                %3114 = vst [vmem:[%s3024 + $0x260] sm:%s3016] %v3113
                %v3115 = vld [vmem:[%s3023 + $0x168] sm:%s3016]
                %3116 = vst [vmem:[%s3024 + $0x268] sm:%s3016] %v3115
                %v3117 = vld [vmem:[%s3023 + $0x170] sm:%s3016]
                %3118 = vst [vmem:[%s3024 + $0x270] sm:%s3016] %v3117
                %v3119 = vld [vmem:[%s3023 + $0x178] sm:%s3016]
                %3120 = vst [vmem:[%s3024 + $0x278] sm:%s3016] %v3119
                %v3121 = vld [vmem:[%s3023 + $0x180] sm:%s3016]
                %3122 = vst [vmem:[%s3024 + $0x300] sm:%s3016] %v3121
                %v3123 = vld [vmem:[%s3023 + $0x188] sm:%s3016]
                %3124 = vst [vmem:[%s3024 + $0x308] sm:%s3016] %v3123
                %v3125 = vld [vmem:[%s3023 + $0x190] sm:%s3016]
                %3126 = vst [vmem:[%s3024 + $0x310] sm:%s3016] %v3125
                %v3127 = vld [vmem:[%s3023 + $0x198] sm:%s3016]
                %3128 = vst [vmem:[%s3024 + $0x318] sm:%s3016] %v3127
                %v3129 = vld [vmem:[%s3023 + $0x1a0] sm:%s3016]
                %3130 = vst [vmem:[%s3024 + $0x320] sm:%s3016] %v3129
                %v3131 = vld [vmem:[%s3023 + $0x1a8] sm:%s3016]
                %3132 = vst [vmem:[%s3024 + $0x328] sm:%s3016] %v3131
                %v3133 = vld [vmem:[%s3023 + $0x1b0] sm:%s3016]
                %3134 = vst [vmem:[%s3024 + $0x330] sm:%s3016] %v3133
                %v3135 = vld [vmem:[%s3023 + $0x1b8] sm:%s3016]
                %3136 = vst [vmem:[%s3024 + $0x338] sm:%s3016] %v3135
                %v3137 = vld [vmem:[%s3023 + $0x1c0] sm:%s3016]
                %3138 = vst [vmem:[%s3024 + $0x340] sm:%s3016] %v3137
                %v3139 = vld [vmem:[%s3023 + $0x1c8] sm:%s3016]
                %3140 = vst [vmem:[%s3024 + $0x348] sm:%s3016] %v3139
                %v3141 = vld [vmem:[%s3023 + $0x1d0] sm:%s3016]
                %3142 = vst [vmem:[%s3024 + $0x350] sm:%s3016] %v3141
                %v3143 = vld [vmem:[%s3023 + $0x1d8] sm:%s3016]
                %3144 = vst [vmem:[%s3024 + $0x358] sm:%s3016] %v3143
                %v3145 = vld [vmem:[%s3023 + $0x1e0] sm:%s3016]
                %3146 = vst [vmem:[%s3024 + $0x360] sm:%s3016] %v3145
                %v3147 = vld [vmem:[%s3023 + $0x1e8] sm:%s3016]
                %3148 = vst [vmem:[%s3024 + $0x368] sm:%s3016] %v3147
                %v3149 = vld [vmem:[%s3023 + $0x1f0] sm:%s3016]
                %3150 = vst [vmem:[%s3024 + $0x370] sm:%s3016] %v3149
                %v3151 = vld [vmem:[%s3023 + $0x1f8] sm:%s3016]
                %3152 = vst [vmem:[%s3024 + $0x378] sm:%s3016] %v3151
              $region53: #{tpu_custom_call.1} parent=47 // loop_footer
                %s3022 = sadd.s32 1, %s3018
              $region54: #{tpu_custom_call.1} parent=47 // loop_footer_branch
                %3017 = sbr.rel target = $region50
              $region55: #{tpu_custom_call.1} parent=47 // loop_exit
                _
            $region48: #{tpu_custom_call.1} parent=39 // pred_fallthru
              _
          $region40: #{tpu_custom_call.1} parent=35 // pred_fallthru
            _
          %3293 = vnop
        $region36: #{tpu_custom_call.1} parent=31 // pred_fallthru
          _
      $region32: #{tpu_custom_call.1} parent=5 // pred_fallthru
        _
      %p3294 = scmp.le.s32.totalorder 2, %s9
      // Predicated region
      $region71: #{tpu_custom_call.1} parent=5 // pred_check
        %p3295 = pneg %p3294
      $region72: #{tpu_custom_call.1} parent=5 // pred_check_branch
        %3297 = sbr.rel (%p3295) target = $region74
      $region73: #{tpu_custom_call.1} parent=5 // pred_region
        %s3298 = ssub.s32 %s9, 2
        // Predicated region
        $region75: #{tpu_custom_call.1} parent=73 // pred_check
          %p3299 = pneg %p120
        $region76: #{tpu_custom_call.1} parent=73 // pred_check_branch
          %3301 = sbr.rel (%p3299) target = $region78
        $region77: #{tpu_custom_call.1} parent=73 // pred_region
          %s3302 = sand.u32 %s105, 1
          %s3303 = sand.u32 %s105, 1
          %s3304 = smul.addr %s3303, 512
          %s3305 = scalar_lea.vmem [#allocation2], %s3304
        $region78: #{tpu_custom_call.1} parent=73 // pred_fallthru
          _
      $region74: #{tpu_custom_call.1} parent=5 // pred_fallthru
        _
    $region6: #{tpu_custom_call.1} parent=1 // loop_footer
      %s13 = sadd.s32 1, %s9
    $region7: #{tpu_custom_call.1} parent=1 // loop_footer_branch
      %8 = sbr.rel target = $region3
    $region8: #{tpu_custom_call.1} parent=1 // loop_exit
      _

</llo_original>
